<compile_context>
chip_gen: v5e
topology: v5e:2x2
jax: 0.10.0
libtpu: 0.0.40
codegen_flags: <defaults>
</compile_context>

<pallas_src>
import inspect
import math

import jax
import jax.numpy as jnp
from jax import lax
from jax.experimental import pallas as pl
from jax.experimental.pallas import tpu as pltpu


# ----------------------------- small helpers -----------------------------

def _supports_pipeline_mode():
    if not hasattr(pl, "Buffered"):
        return False
    try:
        return "pipeline_mode" in inspect.signature(pl.BlockSpec).parameters
    except (TypeError, ValueError):
        return False


def _elementwise_dtype(compute_dtype):
    """bf16 elementwise (GELU) only where the VPU/EUP support it (v6e/v7x)."""
    if jnp.dtype(compute_dtype) != jnp.dtype(jnp.bfloat16):
        return jnp.float32
    try:
        kind = jax.devices()[0].device_kind.lower()
    except Exception:
        return jnp.float32
    if any(tag in kind for tag in ("v6", "v7", "tpu7")):
        return jnp.bfloat16
    return jnp.float32           # v5e / v5p / v4 ...: no bf16 VPU/EUP


# ----------------------------- in-kernel math -----------------------------

def _recip(x, approx):
    # EUP approx reciprocal on the perf path, exact division on the f32 path.
    if approx:
        return pl.reciprocal(x, approx=True)
    return 1.0 / x


def _erf(x, approx):
    # Abramowitz & Stegun 7.1.26 (|abs err| < 1.5e-7).  The rational term is
    # computed in f32 (cheap) so the EUP reciprocal never sees sub-32-bit data.
    a1, a2, a3, a4, a5 = (0.254829592, -0.284496736, 1.421413741,
                          -1.453152027, 1.061405429)
    p = 0.3275911
    ax = jnp.abs(x)
    t = _recip((1.0 + p * ax).astype(jnp.float32), approx).astype(x.dtype)
    poly = ((((a5 * t + a4) * t + a3) * t + a2) * t + a1) * t
    r = 1.0 - poly * jnp.exp(-ax * ax)
    return jnp.where(x >= 0, r, -r)


def _gelu_exact(x, approx):
    # PyTorch nn.GELU() default ("none" approximation): 0.5*x*(1+erf(x/sqrt2))
    return 0.5 * x * (1.0 + _erf(x * (1.0 / math.sqrt(2.0)), approx))


def _layernorm(x, w, b, eps=1e-5):
    mu = jnp.mean(x, axis=-1, keepdims=True)
    var = jnp.mean(jnp.square(x - mu), axis=-1, keepdims=True)
    return (x - mu) * lax.rsqrt(var + eps) * w + b


# ------------------------------- the kernel -------------------------------

def _make_block_kernel(N, D, H, compute_dtype, elementwise_dtype):
    hd = D // H
    cdt = compute_dtype
    edt = elementwise_dtype
    # Approx EUP reciprocals only on the bf16 perf path; exact math otherwise.
    approx = jnp.dtype(cdt) == jnp.dtype(jnp.bfloat16)

    def kernel(x_ref,
               ln1w_ref, ln1b_ref,
               wqkv_ref, bqkv_ref, wo3_ref, bo_ref,
               ln2w_ref, ln2b_ref,
               w1_ref, b1_ref, w2_ref, b2_ref,
               o_ref):
        x = x_ref[0]                                          # (N, D) f32

        # ---------------- attention branch ----------------
        h1 = _layernorm(x, ln1w_ref[...], ln1b_ref[...])      # f32 on the VPU
        # Fused QKV projection: one (N, D) x (D, 3D) MXU matmul, f32 acc.
        # The 1/sqrt(hd) scale is already folded into Wq / bq by the wrapper.
        qkv = jnp.dot(h1.astype(cdt), wqkv_ref[...],
                      preferred_element_type=jnp.float32) + bqkv_ref[...]

        # Head split: (N, 3D) -> three (H, N, hd) operands so every head runs
        # inside ONE batched MXU op (no per-head matmuls / masked stores).
        # The per-head lane slices are unavoidable data movement at hd < 128.
        def split_heads(base):
            heads = [qkv[:, base + hh * hd: base + (hh + 1) * hd]
                     for hh in range(H)]
            return jnp.stack(heads, axis=0).astype(cdt)       # (H, N, hd)

        qh = split_heads(0 * D)
        kh = split_heads(1 * D)
        vh = split_heads(2 * D)

        # Scores for all heads at once: (H, N, hd) x (H, N, hd) -> (H, N, N).
        s = jnp.einsum("hqd,hkd->hqk", qh, kh,
                       preferred_element_type=jnp.float32)
        s = s - jnp.max(s, axis=-1, keepdims=True)
        e = jnp.exp(s)
        p_attn = e * _recip(jnp.sum(e, axis=-1, keepdims=True), approx)

        # P.V for all heads at once: (H, N, N) x (H, N, hd) -> (H, N, hd).
        pv = jnp.einsum("hqk,hkd->hqd", p_attn.astype(cdt), vh,
                        preferred_element_type=jnp.float32)

        # Output projection, head-batched against the (H, hd, D) blocks of
        # Wo^T and reduced over heads.  Mathematically identical to
        # concat(heads) @ Wo^T, but produces one dense (N, D) value with no
        # lane-merging reshape and no masked per-head stores.
        # TODO(synk): when hd is a multiple of 128, merge heads into a single
        # lane-dense (N, D) slab and use one full-K (N,D)x(D,D) matmul instead.
        attn = jnp.sum(
            jnp.einsum("hqd,hdo->hqo", pv.astype(cdt), wo3_ref[...],
                       preferred_element_type=jnp.float32),
            axis=0) + bo_ref[...]
        x1 = x + attn

        # ---------------- MLP branch ----------------
        h2 = _layernorm(x1, ln2w_ref[...], ln2b_ref[...])
        m = jnp.dot(h2.astype(cdt), w1_ref[...],
                    preferred_element_type=jnp.float32) + b1_ref[...]
        # GELU on the (N, 4D) hidden in `edt`: bf16 on v6e/v7x (2x elementwise
        # throughput, no extra cast before the next matmul), f32 on v5e and on
        # the high-precision path.
        m = _gelu_exact(m.astype(edt), approx)
        m = jnp.dot(m.astype(cdt), w2_ref[...],
                    preferred_element_type=jnp.float32) + b2_ref[...]

        o_ref[0] = (x1 + m).astype(o_ref.dtype)

    return kernel


# --------------------------------- wrapper ---------------------------------

def transformer_block(x, params, num_heads, *, compute_dtype=jnp.bfloat16):
    """x: (B, N, D) float32; params use PyTorch layouts (see __main__)."""
    B, N, D = x.shape
    H = num_heads
    assert D % H == 0
    hd = D // H
    cdt = compute_dtype
    edt = _elementwise_dtype(cdt)

    # ---- one-time parameter re-layout (would be the stored layout in a real
    # model, so no per-call cost) ----
    # Fold the 1/sqrt(hd) attention scale into the Q rows of the fused QKV
    # projection (weight AND bias).
    q_scale = jnp.concatenate(
        [jnp.full((D,), 1.0 / math.sqrt(hd), jnp.float32),
         jnp.ones((2 * D,), jnp.float32)])
    wqkv_t = (params["wqkv"] * q_scale[:, None]).T.astype(cdt)      # (D, 3D)
    bqkv = (params["bqkv"] * q_scale[None, :]).astype(jnp.float32)  # (1, 3D)
    # Wo^T as per-head (hd, D) blocks for the head-batched output projection.
    wo3 = params["wo"].T.reshape(H, hd, D).astype(cdt)              # (H, hd, D)
    w1_t = params["w1"].T.astype(cdt)                               # (D, Dh)
    w2_t = params["w2"].T.astype(cdt)                               # (Dh, D)
    Dh = w1_t.shape[1]

    param_list = [params["ln1_w"], params["ln1_b"],
                  wqkv_t, bqkv, wo3, params["bo"],
                  params["ln2_w"], params["ln2_b"],
                  w1_t, params["b1"], w2_t, params["b2"]]

    kernel = _make_block_kernel(N, D, H, cdt, edt)

    # Grid-invariant weights/biases: single-buffered (double-buffering data
    # that never changes across the batch grid is pure VMEM waste), feature-
    # gated on this JAX version supporting per-BlockSpec pipeline_mode.
    weight_kwargs = {}
    if _supports_pipeline_mode():
        weight_kwargs["pipeline_mode"] = pl.Buffered(1)

    def weight_spec(shape):
        nd = len(shape)
        return pl.BlockSpec(shape, lambda b, _nd=nd: (0,) * _nd,
                            **weight_kwargs)

    in_specs = [pl.BlockSpec((1, N, D), lambda b: (b, 0, 0))]
    in_specs += [weight_spec(p.shape) for p in param_list]
    out_specs = pl.BlockSpec((1, N, D), lambda b: (b, 0, 0))

    # ---- VMEM budget + cost hints ----
    def nbytes(a):
        return int(a.size) * jnp.dtype(a.dtype).itemsize

    weight_bytes = sum(nbytes(p) for p in param_list)
    rup = lambda v: -(-v // 128) * 128          # lane padding
    act_bytes = 4 * N * (
        3 * D                      # fused qkv (f32)
        + 3 * H * rup(hd)          # per-head q/k/v (lane padded)
        + 2 * H * rup(N)           # scores + probs
        + H * rup(hd)              # p.v
        + H * D                    # head-batched out-proj partials
        + 2 * Dh                   # MLP hidden (pre / post GELU)
        + 4 * D)                   # x, attn, x+attn, out
    vmem_limit = int(min(127 << 20,
                         max(32 << 20,
                             2 * weight_bytes + 2 * act_bytes + (4 << 20))))

    flops = 2 * B * N * (3 * D * D + 2 * N * D + D * D + 2 * D * Dh)
    transcendentals = B * N * (H * N + Dh)
    bytes_accessed = 2 * B * N * D * 4 + weight_bytes

    # TODO(synk): for large N switch to a (B, N//TQ) grid (both axes
    # "parallel") with flash-style online softmax + a blocked MLP so the
    # (H,N,N) scores / (N,4D) hidden never live whole in VMEM; threshold
    # ~512-1024 on v7x (64 MiB VMEM), ~1-2K on v5e/v6e.  At MAE-decoder
    # scale this monolithic per-batch tile fits.
    return pl.pallas_call(
        kernel,
        out_shape=jax.ShapeDtypeStruct((B, N, D), x.dtype),
        grid_spec=pltpu.PrefetchScalarGridSpec(
            num_scalar_prefetch=0,
            grid=(B,),
            in_specs=in_specs,
            out_specs=out_specs,
        ),
        compiler_params=pltpu.CompilerParams(
            dimension_semantics=("parallel",),
            vmem_limit_bytes=vmem_limit),
        cost_estimate=pl.CostEstimate(
            flops=flops,
            transcendentals=transcendentals,
            bytes_accessed=bytes_accessed),
    )(x, *param_list)


# ----------------------------- pure-JAX reference -----------------------------

def transformer_block_ref(x, params, num_heads):
    B, N, D = x.shape
    hd = D // num_heads

    def ln(v, w, b):
        mu = jnp.mean(v, axis=-1, keepdims=True)
        var = jnp.mean(jnp.square(v - mu), axis=-1, keepdims=True)
        return (v - mu) * lax.rsqrt(var + 1e-5) * w + b

    h = ln(x, params["ln1_w"], params["ln1_b"])
    qkv = h @ params["wqkv"].T + params["bqkv"]              # (B, N, 3D)
    q, k, v = qkv[..., :D], qkv[..., D:2 * D], qkv[..., 2 * D:]

    def split(t):                                            # (B, H, N, hd)
        return t.reshape(B, N, num_heads, hd).transpose(0, 2, 1, 3)

    qh, kh, vh = split(q), split(k), split(v)
    s = jnp.einsum("bhqd,bhkd->bhqk", qh, kh) / math.sqrt(hd)
    p = jax.nn.softmax(s, axis=-1)
    o = jnp.einsum("bhqk,bhkd->bhqd", p, vh)
    o = o.transpose(0, 2, 1, 3).reshape(B, N, D)
    attn = o @ params["wo"].T + params["bo"]
    x1 = x + attn

    h2 = ln(x1, params["ln2_w"], params["ln2_b"])
    m = h2 @ params["w1"].T + params["b1"]
    m = jax.nn.gelu(m, approximate=False)
    m = m @ params["w2"].T + params["b2"]
    return x1 + m


# ----------------------------------- main -----------------------------------

if __name__ == "__main__":
    B, N, D, H = 2, 8, 32, 4
    mlp_ratio = 4.0
    Dh = int(D * mlp_ratio)

    key = jax.random.PRNGKey(0)
    ks = jax.random.split(key, 13)

    # Deterministic synthetic parameters with PyTorch layouts
    # (nn.MultiheadAttention in_proj (3D, D) / out_proj (D, D), nn.Linear
    # (out, in)).  Biases / LN params stored as (1, C) rows for 2-D VMEM tiles.
    params = {
        "ln1_w": 1.0 + 0.1 * jax.random.normal(ks[0], (1, D), jnp.float32),
        "ln1_b": 0.1 * jax.random.normal(ks[1], (1, D), jnp.float32),
        "wqkv":  0.05 * jax.random.normal(ks[2], (3 * D, D), jnp.float32),
        "bqkv":  0.05 * jax.random.normal(ks[3], (1, 3 * D), jnp.float32),
        "wo":    0.05 * jax.random.normal(ks[4], (D, D), jnp.float32),
        "bo":    0.05 * jax.random.normal(ks[5], (1, D), jnp.float32),
        "ln2_w": 1.0 + 0.1 * jax.random.normal(ks[6], (1, D), jnp.float32),
        "ln2_b": 0.1 * jax.random.normal(ks[7], (1, D), jnp.float32),
        "w1":    0.05 * jax.random.normal(ks[8], (Dh, D), jnp.float32),
        "b1":    0.05 * jax.random.normal(ks[9], (1, Dh), jnp.float32),
        "w2":    0.05 * jax.random.normal(ks[10], (D, Dh), jnp.float32),
        "b2":    0.05 * jax.random.normal(ks[11], (1, D), jnp.float32),
    }
    x = jax.random.normal(ks[12], (B, N, D), jnp.float32)

    ref = jax.block_until_ready(transformer_block_ref(x, params, num_heads=H))

    # High-precision path: f32 matmul operands, exact divisions.
    out_f32 = jax.block_until_ready(
        transformer_block(x, params, num_heads=H, compute_dtype=jnp.float32))
    assert out_f32.shape == (B, N, D)
    err_f32 = float(jnp.max(jnp.abs(out_f32 - ref)))
    assert err_f32 < 2e-3, err_f32

    # Default perf path: bf16 MXU operands, f32 accumulation.
    out_bf16 = jax.block_until_ready(
        transformer_block(x, params, num_heads=H, compute_dtype=jnp.bfloat16))
    err_bf16 = float(jnp.max(jnp.abs(out_bf16 - ref)))
    assert err_bf16 < 3e-2, err_bf16

    print("KERNEL_OK")
</pallas_src>

<mosaic_0001>
module attributes {stable_mosaic.version = 11 : i64} {
  func.func @kernel(%arg0: i32, %arg1: memref<1x8x32xf32, #tpu.memory_space<vmem>>, %arg2: memref<1x32xf32, #tpu.memory_space<vmem>>, %arg3: memref<1x32xf32, #tpu.memory_space<vmem>>, %arg4: memref<32x96xf32, #tpu.memory_space<vmem>>, %arg5: memref<1x96xf32, #tpu.memory_space<vmem>>, %arg6: memref<4x8x32xf32, #tpu.memory_space<vmem>>, %arg7: memref<1x32xf32, #tpu.memory_space<vmem>>, %arg8: memref<1x32xf32, #tpu.memory_space<vmem>>, %arg9: memref<1x32xf32, #tpu.memory_space<vmem>>, %arg10: memref<32x128xf32, #tpu.memory_space<vmem>>, %arg11: memref<1x128xf32, #tpu.memory_space<vmem>>, %arg12: memref<128x32xf32, #tpu.memory_space<vmem>>, %arg13: memref<1x32xf32, #tpu.memory_space<vmem>>, %arg14: memref<1x8x32xf32, #tpu.memory_space<vmem>>) attributes {dimension_semantics = [#tpu.dimension_semantics<parallel>], iteration_bounds = array<i64: 2>, scalar_prefetch = 0 : i64, scratch_operands = 0 : i64, tpu.core_type = #tpu.core_type<tc>, window_params = [{transform_indices = @transform_0, window_bounds = array<i64: 1, 8, 32>}, {pipeline_mode = #tpu.pipeline_mode<synchronous>, transform_indices = @transform_1, window_bounds = array<i64: 1, 32>}, {pipeline_mode = #tpu.pipeline_mode<synchronous>, transform_indices = @transform_2, window_bounds = array<i64: 1, 32>}, {pipeline_mode = #tpu.pipeline_mode<synchronous>, transform_indices = @transform_3, window_bounds = array<i64: 32, 96>}, {pipeline_mode = #tpu.pipeline_mode<synchronous>, transform_indices = @transform_4, window_bounds = array<i64: 1, 96>}, {pipeline_mode = #tpu.pipeline_mode<synchronous>, transform_indices = @transform_5, window_bounds = array<i64: 4, 8, 32>}, {pipeline_mode = #tpu.pipeline_mode<synchronous>, transform_indices = @transform_6, window_bounds = array<i64: 1, 32>}, {pipeline_mode = #tpu.pipeline_mode<synchronous>, transform_indices = @transform_7, window_bounds = array<i64: 1, 32>}, {pipeline_mode = #tpu.pipeline_mode<synchronous>, transform_indices = @transform_8, window_bounds = array<i64: 1, 32>}, {pipeline_mode = #tpu.pipeline_mode<synchronous>, transform_indices = @transform_9, window_bounds = array<i64: 32, 128>}, {pipeline_mode = #tpu.pipeline_mode<synchronous>, transform_indices = @transform_10, window_bounds = array<i64: 1, 128>}, {pipeline_mode = #tpu.pipeline_mode<synchronous>, transform_indices = @transform_11, window_bounds = array<i64: 128, 32>}, {pipeline_mode = #tpu.pipeline_mode<synchronous>, transform_indices = @transform_12, window_bounds = array<i64: 1, 32>}, {transform_indices = @transform_13, window_bounds = array<i64: 1, 8, 32>}]} {
    %c0 = arith.constant 0 : index
    %c0_0 = arith.constant 0 : index
    %c0_1 = arith.constant 0 : index
    %0 = vector.load %arg1[%c0, %c0_0, %c0_1] : memref<1x8x32xf32, #tpu.memory_space<vmem>>, vector<1x8x32xf32>
    %1 = vector.shape_cast %0 : vector<1x8x32xf32> to vector<8x32xf32>
    %c0_2 = arith.constant 0 : index
    %c0_3 = arith.constant 0 : index
    %2 = vector.load %arg2[%c0_2, %c0_3] : memref<1x32xf32, #tpu.memory_space<vmem>>, vector<1x32xf32>
    %c0_4 = arith.constant 0 : index
    %c0_5 = arith.constant 0 : index
    %3 = vector.load %arg3[%c0_4, %c0_5] : memref<1x32xf32, #tpu.memory_space<vmem>>, vector<1x32xf32>
    %cst = arith.constant dense<0.000000e+00> : vector<8xf32>
    %4 = vector.multi_reduction <add>, %1, %cst [1] : vector<8x32xf32> to vector<8xf32>
    %5 = vector.shape_cast %4 : vector<8xf32> to vector<8x1xf32>
    %cst_6 = arith.constant 3.200000e+01 : f32
    %6 = vector.broadcast %cst_6 : f32 to vector<8x1xf32>
    %7 = arith.divf %5, %6 : vector<8x1xf32>
    %8 = vector.broadcast %7 : vector<8x1xf32> to vector<8x32xf32>
    %9 = arith.subf %1, %8 : vector<8x32xf32>
    %10 = arith.mulf %9, %9 : vector<8x32xf32>
    %cst_7 = arith.constant dense<0.000000e+00> : vector<8xf32>
    %11 = vector.multi_reduction <add>, %10, %cst_7 [1] : vector<8x32xf32> to vector<8xf32>
    %12 = vector.shape_cast %11 : vector<8xf32> to vector<8x1xf32>
    %cst_8 = arith.constant 3.200000e+01 : f32
    %13 = vector.broadcast %cst_8 : f32 to vector<8x1xf32>
    %14 = arith.divf %12, %13 : vector<8x1xf32>
    %15 = vector.broadcast %7 : vector<8x1xf32> to vector<8x32xf32>
    %16 = arith.subf %1, %15 : vector<8x32xf32>
    %cst_9 = arith.constant 9.99999974E-6 : f32
    %17 = vector.broadcast %cst_9 : f32 to vector<8x1xf32>
    %18 = arith.addf %14, %17 : vector<8x1xf32>
    %19 = math.rsqrt %18 : vector<8x1xf32>
    %20 = vector.broadcast %19 : vector<8x1xf32> to vector<8x32xf32>
    %21 = arith.mulf %16, %20 : vector<8x32xf32>
    %22 = vector.broadcast %2 : vector<1x32xf32> to vector<8x32xf32>
    %23 = arith.mulf %21, %22 : vector<8x32xf32>
    %24 = vector.broadcast %3 : vector<1x32xf32> to vector<8x32xf32>
    %25 = arith.addf %23, %24 : vector<8x32xf32>
    %c0_10 = arith.constant 0 : index
    %c0_11 = arith.constant 0 : index
    %26 = vector.load %arg4[%c0_10, %c0_11] : memref<32x96xf32, #tpu.memory_space<vmem>>, vector<32x96xf32>
    %cst_12 = arith.constant dense<0.000000e+00> : vector<8x96xf32>
    %27 = tpu.matmul %25, %26, %cst_12 {dimension_numbers = #tpu.dot_dimension_numbers<[1], [0], [0], [1], [0, 0, 1, 1], [], []>} : vector<8x32xf32>, vector<32x96xf32>, vector<8x96xf32> -> vector<8x96xf32>
    %c0_13 = arith.constant 0 : index
    %c0_14 = arith.constant 0 : index
    %28 = vector.load %arg5[%c0_13, %c0_14] : memref<1x96xf32, #tpu.memory_space<vmem>>, vector<1x96xf32>
    %29 = vector.broadcast %28 : vector<1x96xf32> to vector<8x96xf32>
    %30 = arith.addf %27, %29 : vector<8x96xf32>
    %31 = vector.extract_strided_slice %30 {offsets = [0, 0], sizes = [8, 8], strides = [1, 1]} : vector<8x96xf32> to vector<8x8xf32>
    %32 = vector.extract_strided_slice %30 {offsets = [0, 8], sizes = [8, 8], strides = [1, 1]} : vector<8x96xf32> to vector<8x8xf32>
    %33 = vector.extract_strided_slice %30 {offsets = [0, 16], sizes = [8, 8], strides = [1, 1]} : vector<8x96xf32> to vector<8x8xf32>
    %34 = vector.extract_strided_slice %30 {offsets = [0, 24], sizes = [8, 8], strides = [1, 1]} : vector<8x96xf32> to vector<8x8xf32>
    %35 = vector.shape_cast %31 : vector<8x8xf32> to vector<1x8x8xf32>
    %36 = vector.shape_cast %32 : vector<8x8xf32> to vector<1x8x8xf32>
    %37 = vector.shape_cast %33 : vector<8x8xf32> to vector<1x8x8xf32>
    %38 = vector.shape_cast %34 : vector<8x8xf32> to vector<1x8x8xf32>
    %39 = tpu.concatenate %35, %36, %37, %38 in 0 : vector<1x8x8xf32>, vector<1x8x8xf32>, vector<1x8x8xf32>, vector<1x8x8xf32> -> vector<4x8x8xf32>
    %40 = vector.extract_strided_slice %30 {offsets = [0, 32], sizes = [8, 8], strides = [1, 1]} : vector<8x96xf32> to vector<8x8xf32>
    %41 = vector.extract_strided_slice %30 {offsets = [0, 40], sizes = [8, 8], strides = [1, 1]} : vector<8x96xf32> to vector<8x8xf32>
    %42 = vector.extract_strided_slice %30 {offsets = [0, 48], sizes = [8, 8], strides = [1, 1]} : vector<8x96xf32> to vector<8x8xf32>
    %43 = vector.extract_strided_slice %30 {offsets = [0, 56], sizes = [8, 8], strides = [1, 1]} : vector<8x96xf32> to vector<8x8xf32>
    %44 = vector.shape_cast %40 : vector<8x8xf32> to vector<1x8x8xf32>
    %45 = vector.shape_cast %41 : vector<8x8xf32> to vector<1x8x8xf32>
    %46 = vector.shape_cast %42 : vector<8x8xf32> to vector<1x8x8xf32>
    %47 = vector.shape_cast %43 : vector<8x8xf32> to vector<1x8x8xf32>
    %48 = tpu.concatenate %44, %45, %46, %47 in 0 : vector<1x8x8xf32>, vector<1x8x8xf32>, vector<1x8x8xf32>, vector<1x8x8xf32> -> vector<4x8x8xf32>
    %49 = vector.extract_strided_slice %30 {offsets = [0, 64], sizes = [8, 8], strides = [1, 1]} : vector<8x96xf32> to vector<8x8xf32>
    %50 = vector.extract_strided_slice %30 {offsets = [0, 72], sizes = [8, 8], strides = [1, 1]} : vector<8x96xf32> to vector<8x8xf32>
    %51 = vector.extract_strided_slice %30 {offsets = [0, 80], sizes = [8, 8], strides = [1, 1]} : vector<8x96xf32> to vector<8x8xf32>
    %52 = vector.extract_strided_slice %30 {offsets = [0, 88], sizes = [8, 8], strides = [1, 1]} : vector<8x96xf32> to vector<8x8xf32>
    %53 = vector.shape_cast %49 : vector<8x8xf32> to vector<1x8x8xf32>
    %54 = vector.shape_cast %50 : vector<8x8xf32> to vector<1x8x8xf32>
    %55 = vector.shape_cast %51 : vector<8x8xf32> to vector<1x8x8xf32>
    %56 = vector.shape_cast %52 : vector<8x8xf32> to vector<1x8x8xf32>
    %57 = tpu.concatenate %53, %54, %55, %56 in 0 : vector<1x8x8xf32>, vector<1x8x8xf32>, vector<1x8x8xf32>, vector<1x8x8xf32> -> vector<4x8x8xf32>
    "tpu.trace_start"() <{level = 10 : i32, message = "hqd,hkd->hqk"}> : () -> ()
    %cst_15 = arith.constant dense<0.000000e+00> : vector<4x8x8xf32>
    %58 = tpu.matmul %39, %48, %cst_15 {dimension_numbers = #tpu.dot_dimension_numbers<[2], [2], [1], [1], [0, 0, 0, 1, 1, 1], [0], [0]>} : vector<4x8x8xf32>, vector<4x8x8xf32>, vector<4x8x8xf32> -> vector<4x8x8xf32>
    "tpu.trace_stop"() : () -> ()
    %cst_16 = arith.constant dense<0xFF800000> : vector<4x8xf32>
    %59 = vector.multi_reduction <maximumf>, %58, %cst_16 [2] : vector<4x8x8xf32> to vector<4x8xf32>
    %60 = vector.shape_cast %59 : vector<4x8xf32> to vector<4x8x1xf32>
    %61 = vector.broadcast %60 : vector<4x8x1xf32> to vector<4x8x8xf32>
    %62 = arith.subf %58, %61 : vector<4x8x8xf32>
    %63 = math.exp %62 : vector<4x8x8xf32>
    %cst_17 = arith.constant dense<0.000000e+00> : vector<4x8xf32>
    %64 = vector.multi_reduction <add>, %63, %cst_17 [2] : vector<4x8x8xf32> to vector<4x8xf32>
    %65 = vector.shape_cast %64 : vector<4x8xf32> to vector<4x8x1xf32>
    %cst_18 = arith.constant 1.000000e+00 : f32
    %66 = vector.broadcast %cst_18 : f32 to vector<4x8x1xf32>
    %67 = arith.divf %66, %65 : vector<4x8x1xf32>
    %68 = vector.broadcast %67 : vector<4x8x1xf32> to vector<4x8x8xf32>
    %69 = arith.mulf %63, %68 : vector<4x8x8xf32>
    "tpu.trace_start"() <{level = 10 : i32, message = "hqk,hkd->hqd"}> : () -> ()
    %cst_19 = arith.constant dense<0.000000e+00> : vector<4x8x8xf32>
    %70 = tpu.matmul %69, %57, %cst_19 {dimension_numbers = #tpu.dot_dimension_numbers<[2], [1], [1], [2], [0, 0, 0, 1, 1, 2], [0], [0]>} : vector<4x8x8xf32>, vector<4x8x8xf32>, vector<4x8x8xf32> -> vector<4x8x8xf32>
    "tpu.trace_stop"() : () -> ()
    %c0_20 = arith.constant 0 : index
    %c0_21 = arith.constant 0 : index
    %c0_22 = arith.constant 0 : index
    %71 = vector.load %arg6[%c0_20, %c0_21, %c0_22] : memref<4x8x32xf32, #tpu.memory_space<vmem>>, vector<4x8x32xf32>
    "tpu.trace_start"() <{level = 10 : i32, message = "hqd,hdo->hqo"}> : () -> ()
    %cst_23 = arith.constant dense<0.000000e+00> : vector<4x8x32xf32>
    %72 = tpu.matmul %70, %71, %cst_23 {dimension_numbers = #tpu.dot_dimension_numbers<[2], [1], [1], [2], [0, 0, 0, 1, 1, 2], [0], [0]>} : vector<4x8x8xf32>, vector<4x8x32xf32>, vector<4x8x32xf32> -> vector<4x8x32xf32>
    "tpu.trace_stop"() : () -> ()
    %cst_24 = arith.constant dense<0.000000e+00> : vector<8x32xf32>
    %73 = vector.multi_reduction <add>, %72, %cst_24 [0] : vector<4x8x32xf32> to vector<8x32xf32>
    %c0_25 = arith.constant 0 : index
    %c0_26 = arith.constant 0 : index
    %74 = vector.load %arg7[%c0_25, %c0_26] : memref<1x32xf32, #tpu.memory_space<vmem>>, vector<1x32xf32>
    %75 = vector.broadcast %74 : vector<1x32xf32> to vector<8x32xf32>
    %76 = arith.addf %73, %75 : vector<8x32xf32>
    %77 = arith.addf %1, %76 : vector<8x32xf32>
    %c0_27 = arith.constant 0 : index
    %c0_28 = arith.constant 0 : index
    %78 = vector.load %arg8[%c0_27, %c0_28] : memref<1x32xf32, #tpu.memory_space<vmem>>, vector<1x32xf32>
    %c0_29 = arith.constant 0 : index
    %c0_30 = arith.constant 0 : index
    %79 = vector.load %arg9[%c0_29, %c0_30] : memref<1x32xf32, #tpu.memory_space<vmem>>, vector<1x32xf32>
    %cst_31 = arith.constant dense<0.000000e+00> : vector<8xf32>
    %80 = vector.multi_reduction <add>, %77, %cst_31 [1] : vector<8x32xf32> to vector<8xf32>
    %81 = vector.shape_cast %80 : vector<8xf32> to vector<8x1xf32>
    %cst_32 = arith.constant 3.200000e+01 : f32
    %82 = vector.broadcast %cst_32 : f32 to vector<8x1xf32>
    %83 = arith.divf %81, %82 : vector<8x1xf32>
    %84 = vector.broadcast %83 : vector<8x1xf32> to vector<8x32xf32>
    %85 = arith.subf %77, %84 : vector<8x32xf32>
    %86 = arith.mulf %85, %85 : vector<8x32xf32>
    %cst_33 = arith.constant dense<0.000000e+00> : vector<8xf32>
    %87 = vector.multi_reduction <add>, %86, %cst_33 [1] : vector<8x32xf32> to vector<8xf32>
    %88 = vector.shape_cast %87 : vector<8xf32> to vector<8x1xf32>
    %cst_34 = arith.constant 3.200000e+01 : f32
    %89 = vector.broadcast %cst_34 : f32 to vector<8x1xf32>
    %90 = arith.divf %88, %89 : vector<8x1xf32>
    %91 = vector.broadcast %83 : vector<8x1xf32> to vector<8x32xf32>
    %92 = arith.subf %77, %91 : vector<8x32xf32>
    %cst_35 = arith.constant 9.99999974E-6 : f32
    %93 = vector.broadcast %cst_35 : f32 to vector<8x1xf32>
    %94 = arith.addf %90, %93 : vector<8x1xf32>
    %95 = math.rsqrt %94 : vector<8x1xf32>
    %96 = vector.broadcast %95 : vector<8x1xf32> to vector<8x32xf32>
    %97 = arith.mulf %92, %96 : vector<8x32xf32>
    %98 = vector.broadcast %78 : vector<1x32xf32> to vector<8x32xf32>
    %99 = arith.mulf %97, %98 : vector<8x32xf32>
    %100 = vector.broadcast %79 : vector<1x32xf32> to vector<8x32xf32>
    %101 = arith.addf %99, %100 : vector<8x32xf32>
    %c0_36 = arith.constant 0 : index
    %c0_37 = arith.constant 0 : index
    %102 = vector.load %arg10[%c0_36, %c0_37] : memref<32x128xf32, #tpu.memory_space<vmem>>, vector<32x128xf32>
    %cst_38 = arith.constant dense<0.000000e+00> : vector<8x128xf32>
    %103 = tpu.matmul %101, %102, %cst_38 {dimension_numbers = #tpu.dot_dimension_numbers<[1], [0], [0], [1], [0, 0, 1, 1], [], []>} : vector<8x32xf32>, vector<32x128xf32>, vector<8x128xf32> -> vector<8x128xf32>
    %c0_39 = arith.constant 0 : index
    %c0_40 = arith.constant 0 : index
    %104 = vector.load %arg11[%c0_39, %c0_40] : memref<1x128xf32, #tpu.memory_space<vmem>>, vector<1x128xf32>
    %105 = vector.broadcast %104 : vector<1x128xf32> to vector<8x128xf32>
    %106 = arith.addf %103, %105 : vector<8x128xf32>
    %cst_41 = arith.constant 5.000000e-01 : f32
    %107 = vector.broadcast %cst_41 : f32 to vector<8x128xf32>
    %108 = arith.mulf %107, %106 : vector<8x128xf32>
    %cst_42 = arith.constant 0.707106769 : f32
    %109 = vector.broadcast %cst_42 : f32 to vector<8x128xf32>
    %110 = arith.mulf %106, %109 : vector<8x128xf32>
    %111 = math.absf %110 : vector<8x128xf32>
    %cst_43 = arith.constant 0.327591091 : f32
    %112 = vector.broadcast %cst_43 : f32 to vector<8x128xf32>
    %113 = arith.mulf %112, %111 : vector<8x128xf32>
    %cst_44 = arith.constant 1.000000e+00 : f32
    %114 = vector.broadcast %cst_44 : f32 to vector<8x128xf32>
    %115 = arith.addf %114, %113 : vector<8x128xf32>
    %cst_45 = arith.constant 1.000000e+00 : f32
    %116 = vector.broadcast %cst_45 : f32 to vector<8x128xf32>
    %117 = arith.divf %116, %115 : vector<8x128xf32>
    %cst_46 = arith.constant 1.06140542 : f32
    %118 = vector.broadcast %cst_46 : f32 to vector<8x128xf32>
    %119 = arith.mulf %118, %117 : vector<8x128xf32>
    %cst_47 = arith.constant -1.45315206 : f32
    %120 = vector.broadcast %cst_47 : f32 to vector<8x128xf32>
    %121 = arith.addf %119, %120 : vector<8x128xf32>
    %122 = arith.mulf %121, %117 : vector<8x128xf32>
    %cst_48 = arith.constant 1.42141378 : f32
    %123 = vector.broadcast %cst_48 : f32 to vector<8x128xf32>
    %124 = arith.addf %122, %123 : vector<8x128xf32>
    %125 = arith.mulf %124, %117 : vector<8x128xf32>
    %cst_49 = arith.constant -0.284496725 : f32
    %126 = vector.broadcast %cst_49 : f32 to vector<8x128xf32>
    %127 = arith.addf %125, %126 : vector<8x128xf32>
    %128 = arith.mulf %127, %117 : vector<8x128xf32>
    %cst_50 = arith.constant 0.254829586 : f32
    %129 = vector.broadcast %cst_50 : f32 to vector<8x128xf32>
    %130 = arith.addf %128, %129 : vector<8x128xf32>
    %131 = arith.mulf %130, %117 : vector<8x128xf32>
    %cst_51 = arith.constant 0.000000e+00 : f32
    %132 = vector.broadcast %cst_51 : f32 to vector<8x128xf32>
    %133 = arith.subf %132, %111 : vector<8x128xf32>
    %134 = arith.mulf %133, %111 : vector<8x128xf32>
    %135 = math.exp %134 : vector<8x128xf32>
    %136 = arith.mulf %131, %135 : vector<8x128xf32>
    %cst_52 = arith.constant 1.000000e+00 : f32
    %137 = vector.broadcast %cst_52 : f32 to vector<8x128xf32>
    %138 = arith.subf %137, %136 : vector<8x128xf32>
    %cst_53 = arith.constant 0.000000e+00 : f32
    %139 = vector.broadcast %cst_53 : f32 to vector<8x128xf32>
    %140 = arith.cmpf oge, %110, %139 : vector<8x128xf32>
    %cst_54 = arith.constant 0.000000e+00 : f32
    %141 = vector.broadcast %cst_54 : f32 to vector<8x128xf32>
    %142 = arith.subf %141, %138 : vector<8x128xf32>
    %143 = arith.select %140, %138, %142 : vector<8x128xi1>, vector<8x128xf32>
    %cst_55 = arith.constant 1.000000e+00 : f32
    %144 = vector.broadcast %cst_55 : f32 to vector<8x128xf32>
    %145 = arith.addf %144, %143 : vector<8x128xf32>
    %146 = arith.mulf %108, %145 : vector<8x128xf32>
    %c0_56 = arith.constant 0 : index
    %c0_57 = arith.constant 0 : index
    %147 = vector.load %arg12[%c0_56, %c0_57] : memref<128x32xf32, #tpu.memory_space<vmem>>, vector<128x32xf32>
    %cst_58 = arith.constant dense<0.000000e+00> : vector<8x32xf32>
    %148 = tpu.matmul %146, %147, %cst_58 {dimension_numbers = #tpu.dot_dimension_numbers<[1], [0], [0], [1], [0, 0, 1, 1], [], []>} : vector<8x128xf32>, vector<128x32xf32>, vector<8x32xf32> -> vector<8x32xf32>
    %c0_59 = arith.constant 0 : index
    %c0_60 = arith.constant 0 : index
    %149 = vector.load %arg13[%c0_59, %c0_60] : memref<1x32xf32, #tpu.memory_space<vmem>>, vector<1x32xf32>
    %150 = vector.broadcast %149 : vector<1x32xf32> to vector<8x32xf32>
    %151 = arith.addf %148, %150 : vector<8x32xf32>
    %152 = arith.addf %77, %151 : vector<8x32xf32>
    %c0_61 = arith.constant 0 : index
    %c0_62 = arith.constant 0 : index
    %c0_63 = arith.constant 0 : index
    %153 = vector.load %arg14[%c0_61, %c0_62, %c0_63] : memref<1x8x32xf32, #tpu.memory_space<vmem>>, vector<1x8x32xf32>
    %154 = vector.shape_cast %153 : vector<1x8x32xf32> to vector<8x32xf32>
    %155 = vector.shape_cast %152 : vector<8x32xf32> to vector<1x8x32xf32>
    tpu.vector_store %arg14[%c0_61, %c0_62, %c0_63], %155 {strides = array<i32>} : memref<1x8x32xf32, #tpu.memory_space<vmem>>, vector<1x8x32xf32>,
    return
  }
  func.func @transform_0(%arg0: i32) -> (i32, i32, i32) {
    %c0_i32 = arith.constant 0 : i32
    %c0_i32_0 = arith.constant 0 : i32
    %c0_i32_1 = arith.constant 0 : i32
    return %arg0, %c0_i32, %c0_i32_0 : i32, i32, i32
  }
  func.func @transform_1(%arg0: i32) -> (i32, i32) {
    %c0_i32 = arith.constant 0 : i32
    %c0_i32_0 = arith.constant 0 : i32
    %c0_i32_1 = arith.constant 0 : i32
    return %c0_i32, %c0_i32_0 : i32, i32
  }
  func.func @transform_2(%arg0: i32) -> (i32, i32) {
    %c0_i32 = arith.constant 0 : i32
    %c0_i32_0 = arith.constant 0 : i32
    %c0_i32_1 = arith.constant 0 : i32
    return %c0_i32, %c0_i32_0 : i32, i32
  }
  func.func @transform_3(%arg0: i32) -> (i32, i32) {
    %c0_i32 = arith.constant 0 : i32
    %c0_i32_0 = arith.constant 0 : i32
    %c0_i32_1 = arith.constant 0 : i32
    return %c0_i32, %c0_i32_0 : i32, i32
  }
  func.func @transform_4(%arg0: i32) -> (i32, i32) {
    %c0_i32 = arith.constant 0 : i32
    %c0_i32_0 = arith.constant 0 : i32
    %c0_i32_1 = arith.constant 0 : i32
    return %c0_i32, %c0_i32_0 : i32, i32
  }
  func.func @transform_5(%arg0: i32) -> (i32, i32, i32) {
    %c0_i32 = arith.constant 0 : i32
    %c0_i32_0 = arith.constant 0 : i32
    %c0_i32_1 = arith.constant 0 : i32
    %c0_i32_2 = arith.constant 0 : i32
    return %c0_i32, %c0_i32_0, %c0_i32_1 : i32, i32, i32
  }
  func.func @transform_6(%arg0: i32) -> (i32, i32) {
    %c0_i32 = arith.constant 0 : i32
    %c0_i32_0 = arith.constant 0 : i32
    %c0_i32_1 = arith.constant 0 : i32
    return %c0_i32, %c0_i32_0 : i32, i32
  }
  func.func @transform_7(%arg0: i32) -> (i32, i32) {
    %c0_i32 = arith.constant 0 : i32
    %c0_i32_0 = arith.constant 0 : i32
    %c0_i32_1 = arith.constant 0 : i32
    return %c0_i32, %c0_i32_0 : i32, i32
  }
  func.func @transform_8(%arg0: i32) -> (i32, i32) {
    %c0_i32 = arith.constant 0 : i32
    %c0_i32_0 = arith.constant 0 : i32
    %c0_i32_1 = arith.constant 0 : i32
    return %c0_i32, %c0_i32_0 : i32, i32
  }
  func.func @transform_9(%arg0: i32) -> (i32, i32) {
    %c0_i32 = arith.constant 0 : i32
    %c0_i32_0 = arith.constant 0 : i32
    %c0_i32_1 = arith.constant 0 : i32
    return %c0_i32, %c0_i32_0 : i32, i32
  }
  func.func @transform_10(%arg0: i32) -> (i32, i32) {
    %c0_i32 = arith.constant 0 : i32
    %c0_i32_0 = arith.constant 0 : i32
    %c0_i32_1 = arith.constant 0 : i32
    return %c0_i32, %c0_i32_0 : i32, i32
  }
  func.func @transform_11(%arg0: i32) -> (i32, i32) {
    %c0_i32 = arith.constant 0 : i32
    %c0_i32_0 = arith.constant 0 : i32
    %c0_i32_1 = arith.constant 0 : i32
    return %c0_i32, %c0_i32_0 : i32, i32
  }
  func.func @transform_12(%arg0: i32) -> (i32, i32) {
    %c0_i32 = arith.constant 0 : i32
    %c0_i32_0 = arith.constant 0 : i32
    %c0_i32_1 = arith.constant 0 : i32
    return %c0_i32, %c0_i32_0 : i32, i32
  }
  func.func @transform_13(%arg0: i32) -> (i32, i32, i32) {
    %c0_i32 = arith.constant 0 : i32
    %c0_i32_0 = arith.constant 0 : i32
    %c0_i32_1 = arith.constant 0 : i32
    return %arg0, %c0_i32, %c0_i32_0 : i32, i32, i32
  }
}

</mosaic_0001>

<llo_original>
// kernel: tpu_custom_call.1
$region0: #{tpu_custom_call.1}
  #allocation0 [shape = 'u32[]', space=smem, size = 0x4, offset = 0x4, fixed_abs, tag = 'smem constant byte address 0x4 - core index']
  #allocation1 [shape = 'u32[72,128]{1,0:T(1,128)}', space=vmem, size = 0x9000, scoped, tag = 'internal scratch']
  %s0 = inlined_call_operand.vmem [shape: f32[2,8,32], index: 0, kind: input, shape index: {}]
  %s1 = inlined_call_operand.vmem [shape: f32[1,32], index: 1, kind: input, shape index: {}]
  %s2 = inlined_call_operand.vmem [shape: f32[1,32], index: 2, kind: input, shape index: {}]
  %s3 = inlined_call_operand.vmem [shape: f32[32,96], index: 3, kind: input, shape index: {}]
  %s4 = inlined_call_operand.vmem [shape: f32[1,96], index: 4, kind: input, shape index: {}]
  %s5 = inlined_call_operand.vmem [shape: f32[4,8,32], index: 5, kind: input, shape index: {}]
  %s6 = inlined_call_operand.vmem [shape: f32[1,32], index: 6, kind: input, shape index: {}]
  %s7 = inlined_call_operand.vmem [shape: f32[1,32], index: 7, kind: input, shape index: {}]
  %s8 = inlined_call_operand.vmem [shape: f32[1,32], index: 8, kind: input, shape index: {}]
  %s9 = inlined_call_operand.vmem [shape: f32[32,128], index: 9, kind: input, shape index: {}]
  %s10 = inlined_call_operand.vmem [shape: f32[1,128], index: 10, kind: input, shape index: {}]
  %s11 = inlined_call_operand.vmem [shape: f32[128,32], index: 11, kind: input, shape index: {}]
  %s12 = inlined_call_operand.vmem [shape: f32[1,32], index: 12, kind: input, shape index: {}]
  %s13 = inlined_call_operand.hbm [shape: f32[2,8,32], index: 13, kind: output, shape index: {}]
  %s14 = sld [smem:[#allocation0]]
  $region85: #{tpu_custom_call.1} parent=0
    _
  %s16 = ssub.s32 1, %s14
  %s17 = scalar_select 0, %s16, %s14
  $region1: #{tpu_custom_call.1} parent=0
    #allocation2 [shape = 'u8[8192]{0}', space=vmem, size = 0x2000, scoped, tag = 'output window, operand 0']
    #allocation3 [shape = 's32[2]{0}', space=sflag, size = 0x8, scoped, tag = 'scoped memory for tpu_custom_call.1']
    %18 = vsyncpa [#allocation3], 0
    %s19 = scalar_lea.sflag [#allocation3], 1
    %20 = vsyncpa %s19, 0
    loop: start=0, step=1, limit=4
    $region2: #{tpu_custom_call.1} parent=1 // loop_pre_header
      _
    $region3: #{tpu_custom_call.1} parent=1 // loop_header
      %s22 = sphi 0, %s26
      %p23 = scmp.ge.s32.totalorder %s22, 4
      %s32 = sphi 0, %s34
      %s35 = sphi 0, %s32
      %s36 = sphi 0, %s35
      %s52 = sphi 0, %s36
      %s56 = sphi 0, %s56
      %s58 = sphi 0, %s56
      %s59 = sphi 0, %s58
      %s73 = sphi 0, %s59
      %s77 = sphi 0, %s77
      %s79 = sphi 0, %s77
      %s80 = sphi 0, %s79
      %s94 = sphi 0, %s80
      %s98 = sphi 0, %s98
      %s100 = sphi 0, %s98
      %s101 = sphi 0, %s100
      %s115 = sphi 0, %s101
      %s119 = sphi 0, %s119
      %s121 = sphi 0, %s119
      %s122 = sphi 0, %s121
      %s136 = sphi 0, %s122
      %s140 = sphi 0, %s140
      %s142 = sphi 0, %s140
      %s143 = sphi 0, %s142
      %s157 = sphi 0, %s143
      %s161 = sphi 0, %s161
      %s163 = sphi 0, %s161
      %s164 = sphi 0, %s163
      %s178 = sphi 0, %s164
      %s182 = sphi 0, %s182
      %s184 = sphi 0, %s182
      %s185 = sphi 0, %s184
      %s199 = sphi 0, %s185
      %s203 = sphi 0, %s203
      %s205 = sphi 0, %s203
      %s206 = sphi 0, %s205
      %s220 = sphi 0, %s206
      %s224 = sphi 0, %s224
      %s226 = sphi 0, %s224
      %s227 = sphi 0, %s226
      %s241 = sphi 0, %s227
      %s245 = sphi 0, %s245
      %s247 = sphi 0, %s245
      %s248 = sphi 0, %s247
      %s262 = sphi 0, %s248
      %s266 = sphi 0, %s266
      %s268 = sphi 0, %s266
      %s269 = sphi 0, %s268
      %s283 = sphi 0, %s269
      %s287 = sphi 0, %s287
      %s289 = sphi 0, %s287
      %s290 = sphi 0, %s289
      %s304 = sphi 0, %s290
      %s310 = sphi 0, %s312
      %s313 = sphi 0, %s310
      %s314 = sphi 0, %s313
      %s330 = sphi 0, %s314
    $region4: #{tpu_custom_call.1} parent=1 // loop_header_branch
      %25 = sbr.rel (%p23) target = $region8
    $region5: #{tpu_custom_call.1} parent=1 // loop_body
      %s27 = ssub.s32 %s22, 1
      %s28 = ssub.s32 %s22, 2
      %s29 = sadd.s32 %s22, 1
      %s30 = ssub.s32 %s22, %s29
      %p31 = scmp.eq.s32.totalorder %s30, 0
      %s33 = sadd.s32 %s32, 1
      %s34 = scalar_select %p31, %s32, %s33
      %p37 = pneg %p31
      %p38 = scmp.eq.s32.totalorder %s22, 1
      %p39 = por %p37, %p38
      %p40 = scmp.ne.s32.totalorder %s32, %s35
      %p41 = scmp.eq.s32.totalorder %s22, 0
      %p42 = por %p40, %p41
      %p43 = scmp.ne.s32.totalorder %s32, %s35
      %p44 = scmp.eq.s32.totalorder %s27, 1
      %p45 = por %p43, %p44
      %p46 = scmp.ne.s32.totalorder %s35, %s36
      %p47 = scmp.eq.s32.totalorder %s27, 0
      %p48 = por %p46, %p47
      %p49 = scmp.ne.s32.totalorder %s35, %s36
      %p50 = scmp.eq.s32.totalorder %s28, 1
      %p51 = por %p49, %p50
      %p53 = scmp.ne.s32.totalorder %s36, %s52
      %p54 = scmp.eq.s32.totalorder %s28, 0
      %p55 = por %p53, %p54
      %s57 = sadd.s32 %s56, 1
      %p60 = scmp.eq.s32.totalorder %s22, 1
      %p61 = scmp.ne.s32.totalorder %s56, %s58
      %p62 = scmp.eq.s32.totalorder %s22, 0
      %p63 = por %p61, %p62
      %p64 = scmp.ne.s32.totalorder %s56, %s58
      %p65 = scmp.eq.s32.totalorder %s27, 1
      %p66 = por %p64, %p65
      %p67 = scmp.ne.s32.totalorder %s58, %s59
      %p68 = scmp.eq.s32.totalorder %s27, 0
      %p69 = por %p67, %p68
      %p70 = scmp.ne.s32.totalorder %s58, %s59
      %p71 = scmp.eq.s32.totalorder %s28, 1
      %p72 = por %p70, %p71
      %p74 = scmp.ne.s32.totalorder %s59, %s73
      %p75 = scmp.eq.s32.totalorder %s28, 0
      %p76 = por %p74, %p75
      %s78 = sadd.s32 %s77, 1
      %p81 = scmp.eq.s32.totalorder %s22, 1
      %p82 = scmp.ne.s32.totalorder %s77, %s79
      %p83 = scmp.eq.s32.totalorder %s22, 0
      %p84 = por %p82, %p83
      %p85 = scmp.ne.s32.totalorder %s77, %s79
      %p86 = scmp.eq.s32.totalorder %s27, 1
      %p87 = por %p85, %p86
      %p88 = scmp.ne.s32.totalorder %s79, %s80
      %p89 = scmp.eq.s32.totalorder %s27, 0
      %p90 = por %p88, %p89
      %p91 = scmp.ne.s32.totalorder %s79, %s80
      %p92 = scmp.eq.s32.totalorder %s28, 1
      %p93 = por %p91, %p92
      %p95 = scmp.ne.s32.totalorder %s80, %s94
      %p96 = scmp.eq.s32.totalorder %s28, 0
      %p97 = por %p95, %p96
      %s99 = sadd.s32 %s98, 1
      %p102 = scmp.eq.s32.totalorder %s22, 1
      %p103 = scmp.ne.s32.totalorder %s98, %s100
      %p104 = scmp.eq.s32.totalorder %s22, 0
      %p105 = por %p103, %p104
      %p106 = scmp.ne.s32.totalorder %s98, %s100
      %p107 = scmp.eq.s32.totalorder %s27, 1
      %p108 = por %p106, %p107
      %p109 = scmp.ne.s32.totalorder %s100, %s101
      %p110 = scmp.eq.s32.totalorder %s27, 0
      %p111 = por %p109, %p110
      %p112 = scmp.ne.s32.totalorder %s100, %s101
      %p113 = scmp.eq.s32.totalorder %s28, 1
      %p114 = por %p112, %p113
      %p116 = scmp.ne.s32.totalorder %s101, %s115
      %p117 = scmp.eq.s32.totalorder %s28, 0
      %p118 = por %p116, %p117
      %s120 = sadd.s32 %s119, 1
      %p123 = scmp.eq.s32.totalorder %s22, 1
      %p124 = scmp.ne.s32.totalorder %s119, %s121
      %p125 = scmp.eq.s32.totalorder %s22, 0
      %p126 = por %p124, %p125
      %p127 = scmp.ne.s32.totalorder %s119, %s121
      %p128 = scmp.eq.s32.totalorder %s27, 1
      %p129 = por %p127, %p128
      %p130 = scmp.ne.s32.totalorder %s121, %s122
      %p131 = scmp.eq.s32.totalorder %s27, 0
      %p132 = por %p130, %p131
      %p133 = scmp.ne.s32.totalorder %s121, %s122
      %p134 = scmp.eq.s32.totalorder %s28, 1
      %p135 = por %p133, %p134
      %p137 = scmp.ne.s32.totalorder %s122, %s136
      %p138 = scmp.eq.s32.totalorder %s28, 0
      %p139 = por %p137, %p138
      %s141 = sadd.s32 %s140, 1
      %p144 = scmp.eq.s32.totalorder %s22, 1
      %p145 = scmp.ne.s32.totalorder %s140, %s142
      %p146 = scmp.eq.s32.totalorder %s22, 0
      %p147 = por %p145, %p146
      %p148 = scmp.ne.s32.totalorder %s140, %s142
      %p149 = scmp.eq.s32.totalorder %s27, 1
      %p150 = por %p148, %p149
      %p151 = scmp.ne.s32.totalorder %s142, %s143
      %p152 = scmp.eq.s32.totalorder %s27, 0
      %p153 = por %p151, %p152
      %p154 = scmp.ne.s32.totalorder %s142, %s143
      %p155 = scmp.eq.s32.totalorder %s28, 1
      %p156 = por %p154, %p155
      %p158 = scmp.ne.s32.totalorder %s143, %s157
      %p159 = scmp.eq.s32.totalorder %s28, 0
      %p160 = por %p158, %p159
      %s162 = sadd.s32 %s161, 1
      %p165 = scmp.eq.s32.totalorder %s22, 1
      %p166 = scmp.ne.s32.totalorder %s161, %s163
      %p167 = scmp.eq.s32.totalorder %s22, 0
      %p168 = por %p166, %p167
      %p169 = scmp.ne.s32.totalorder %s161, %s163
      %p170 = scmp.eq.s32.totalorder %s27, 1
      %p171 = por %p169, %p170
      %p172 = scmp.ne.s32.totalorder %s163, %s164
      %p173 = scmp.eq.s32.totalorder %s27, 0
      %p174 = por %p172, %p173
      %p175 = scmp.ne.s32.totalorder %s163, %s164
      %p176 = scmp.eq.s32.totalorder %s28, 1
      %p177 = por %p175, %p176
      %p179 = scmp.ne.s32.totalorder %s164, %s178
      %p180 = scmp.eq.s32.totalorder %s28, 0
      %p181 = por %p179, %p180
      %s183 = sadd.s32 %s182, 1
      %p186 = scmp.eq.s32.totalorder %s22, 1
      %p187 = scmp.ne.s32.totalorder %s182, %s184
      %p188 = scmp.eq.s32.totalorder %s22, 0
      %p189 = por %p187, %p188
      %p190 = scmp.ne.s32.totalorder %s182, %s184
      %p191 = scmp.eq.s32.totalorder %s27, 1
      %p192 = por %p190, %p191
      %p193 = scmp.ne.s32.totalorder %s184, %s185
      %p194 = scmp.eq.s32.totalorder %s27, 0
      %p195 = por %p193, %p194
      %p196 = scmp.ne.s32.totalorder %s184, %s185
      %p197 = scmp.eq.s32.totalorder %s28, 1
      %p198 = por %p196, %p197
      %p200 = scmp.ne.s32.totalorder %s185, %s199
      %p201 = scmp.eq.s32.totalorder %s28, 0
      %p202 = por %p200, %p201
      %s204 = sadd.s32 %s203, 1
      %p207 = scmp.eq.s32.totalorder %s22, 1
      %p208 = scmp.ne.s32.totalorder %s203, %s205
      %p209 = scmp.eq.s32.totalorder %s22, 0
      %p210 = por %p208, %p209
      %p211 = scmp.ne.s32.totalorder %s203, %s205
      %p212 = scmp.eq.s32.totalorder %s27, 1
      %p213 = por %p211, %p212
      %p214 = scmp.ne.s32.totalorder %s205, %s206
      %p215 = scmp.eq.s32.totalorder %s27, 0
      %p216 = por %p214, %p215
      %p217 = scmp.ne.s32.totalorder %s205, %s206
      %p218 = scmp.eq.s32.totalorder %s28, 1
      %p219 = por %p217, %p218
      %p221 = scmp.ne.s32.totalorder %s206, %s220
      %p222 = scmp.eq.s32.totalorder %s28, 0
      %p223 = por %p221, %p222
      %s225 = sadd.s32 %s224, 1
      %p228 = scmp.eq.s32.totalorder %s22, 1
      %p229 = scmp.ne.s32.totalorder %s224, %s226
      %p230 = scmp.eq.s32.totalorder %s22, 0
      %p231 = por %p229, %p230
      %p232 = scmp.ne.s32.totalorder %s224, %s226
      %p233 = scmp.eq.s32.totalorder %s27, 1
      %p234 = por %p232, %p233
      %p235 = scmp.ne.s32.totalorder %s226, %s227
      %p236 = scmp.eq.s32.totalorder %s27, 0
      %p237 = por %p235, %p236
      %p238 = scmp.ne.s32.totalorder %s226, %s227
      %p239 = scmp.eq.s32.totalorder %s28, 1
      %p240 = por %p238, %p239
      %p242 = scmp.ne.s32.totalorder %s227, %s241
      %p243 = scmp.eq.s32.totalorder %s28, 0
      %p244 = por %p242, %p243
      %s246 = sadd.s32 %s245, 1
      %p249 = scmp.eq.s32.totalorder %s22, 1
      %p250 = scmp.ne.s32.totalorder %s245, %s247
      %p251 = scmp.eq.s32.totalorder %s22, 0
      %p252 = por %p250, %p251
      %p253 = scmp.ne.s32.totalorder %s245, %s247
      %p254 = scmp.eq.s32.totalorder %s27, 1
      %p255 = por %p253, %p254
      %p256 = scmp.ne.s32.totalorder %s247, %s248
      %p257 = scmp.eq.s32.totalorder %s27, 0
      %p258 = por %p256, %p257
      %p259 = scmp.ne.s32.totalorder %s247, %s248
      %p260 = scmp.eq.s32.totalorder %s28, 1
      %p261 = por %p259, %p260
      %p263 = scmp.ne.s32.totalorder %s248, %s262
      %p264 = scmp.eq.s32.totalorder %s28, 0
      %p265 = por %p263, %p264
      %s267 = sadd.s32 %s266, 1
      %p270 = scmp.eq.s32.totalorder %s22, 1
      %p271 = scmp.ne.s32.totalorder %s266, %s268
      %p272 = scmp.eq.s32.totalorder %s22, 0
      %p273 = por %p271, %p272
      %p274 = scmp.ne.s32.totalorder %s266, %s268
      %p275 = scmp.eq.s32.totalorder %s27, 1
      %p276 = por %p274, %p275
      %p277 = scmp.ne.s32.totalorder %s268, %s269
      %p278 = scmp.eq.s32.totalorder %s27, 0
      %p279 = por %p277, %p278
      %p280 = scmp.ne.s32.totalorder %s268, %s269
      %p281 = scmp.eq.s32.totalorder %s28, 1
      %p282 = por %p280, %p281
      %p284 = scmp.ne.s32.totalorder %s269, %s283
      %p285 = scmp.eq.s32.totalorder %s28, 0
      %p286 = por %p284, %p285
      %s288 = sadd.s32 %s287, 1
      %p291 = scmp.eq.s32.totalorder %s22, 1
      %p292 = scmp.ne.s32.totalorder %s287, %s289
      %p293 = scmp.eq.s32.totalorder %s22, 0
      %p294 = por %p292, %p293
      %p295 = scmp.ne.s32.totalorder %s287, %s289
      %p296 = scmp.eq.s32.totalorder %s27, 1
      %p297 = por %p295, %p296
      %p298 = scmp.ne.s32.totalorder %s289, %s290
      %p299 = scmp.eq.s32.totalorder %s27, 0
      %p300 = por %p298, %p299
      %p301 = scmp.ne.s32.totalorder %s289, %s290
      %p302 = scmp.eq.s32.totalorder %s28, 1
      %p303 = por %p301, %p302
      %p305 = scmp.ne.s32.totalorder %s290, %s304
      %p306 = scmp.eq.s32.totalorder %s28, 0
      %p307 = por %p305, %p306
      %s308 = ssub.s32 %s22, %s29
      %p309 = scmp.eq.s32.totalorder %s308, 0
      %s311 = sadd.s32 %s310, 1
      %s312 = scalar_select %p309, %s310, %s311
      %p315 = pneg %p309
      %p316 = scmp.eq.s32.totalorder %s22, 1
      %p317 = por %p315, %p316
      %p318 = scmp.ne.s32.totalorder %s310, %s313
      %p319 = scmp.eq.s32.totalorder %s22, 0
      %p320 = por %p318, %p319
      %p321 = scmp.ne.s32.totalorder %s310, %s313
      %p322 = scmp.eq.s32.totalorder %s27, 1
      %p323 = por %p321, %p322
      %p324 = scmp.ne.s32.totalorder %s313, %s314
      %p325 = scmp.eq.s32.totalorder %s27, 0
      %p326 = por %p324, %p325
      %p327 = scmp.ne.s32.totalorder %s313, %s314
      %p328 = scmp.eq.s32.totalorder %s28, 1
      %p329 = por %p327, %p328
      %p331 = scmp.ne.s32.totalorder %s314, %s330
      %p332 = scmp.eq.s32.totalorder %s28, 0
      %p333 = por %p331, %p332
      %p334 = scmp.le.s32.totalorder 1, %s22
      %p335 = scmp.lt.s32.totalorder %s22, 3
      %p336 = pnand %p334, %p335
      %p337 = pneg %p336
      // Predicated region
      $region9: #{tpu_custom_call.1} parent=5 // pred_check
        _
      $region10: #{tpu_custom_call.1} parent=5 // pred_check_branch
        %339 = sbr.rel (%p336) target = $region12
      $region11: #{tpu_custom_call.1} parent=5 // pred_region
        %s340 = ssub.s32 %s22, 1
        // Predicated region
        $region13: #{tpu_custom_call.1} parent=11 // pred_check
          %p341 = pneg %p69
        $region14: #{tpu_custom_call.1} parent=11 // pred_check_branch
          %343 = sbr.rel (%p341) target = $region16
        $region15: #{tpu_custom_call.1} parent=11 // pred_region
          _
        $region16: #{tpu_custom_call.1} parent=11 // pred_fallthru
          _
        // Predicated region
        $region17: #{tpu_custom_call.1} parent=11 // pred_check
          %p344 = pneg %p90
        $region18: #{tpu_custom_call.1} parent=11 // pred_check_branch
          %346 = sbr.rel (%p344) target = $region20
        $region19: #{tpu_custom_call.1} parent=11 // pred_region
          _
        $region20: #{tpu_custom_call.1} parent=11 // pred_fallthru
          _
        // Predicated region
        $region21: #{tpu_custom_call.1} parent=11 // pred_check
          %p347 = pneg %p111
        $region22: #{tpu_custom_call.1} parent=11 // pred_check_branch
          %349 = sbr.rel (%p347) target = $region24
        $region23: #{tpu_custom_call.1} parent=11 // pred_region
          _
        $region24: #{tpu_custom_call.1} parent=11 // pred_fallthru
          _
        // Predicated region
        $region25: #{tpu_custom_call.1} parent=11 // pred_check
          %p350 = pneg %p132
        $region26: #{tpu_custom_call.1} parent=11 // pred_check_branch
          %352 = sbr.rel (%p350) target = $region28
        $region27: #{tpu_custom_call.1} parent=11 // pred_region
          _
        $region28: #{tpu_custom_call.1} parent=11 // pred_fallthru
          _
        // Predicated region
        $region29: #{tpu_custom_call.1} parent=11 // pred_check
          %p353 = pneg %p153
        $region30: #{tpu_custom_call.1} parent=11 // pred_check_branch
          %355 = sbr.rel (%p353) target = $region32
        $region31: #{tpu_custom_call.1} parent=11 // pred_region
          _
        $region32: #{tpu_custom_call.1} parent=11 // pred_fallthru
          _
        // Predicated region
        $region33: #{tpu_custom_call.1} parent=11 // pred_check
          %p356 = pneg %p174
        $region34: #{tpu_custom_call.1} parent=11 // pred_check_branch
          %358 = sbr.rel (%p356) target = $region36
        $region35: #{tpu_custom_call.1} parent=11 // pred_region
          _
        $region36: #{tpu_custom_call.1} parent=11 // pred_fallthru
          _
        // Predicated region
        $region37: #{tpu_custom_call.1} parent=11 // pred_check
          %p359 = pneg %p195
        $region38: #{tpu_custom_call.1} parent=11 // pred_check_branch
          %361 = sbr.rel (%p359) target = $region40
        $region39: #{tpu_custom_call.1} parent=11 // pred_region
          _
        $region40: #{tpu_custom_call.1} parent=11 // pred_fallthru
          _
        // Predicated region
        $region41: #{tpu_custom_call.1} parent=11 // pred_check
          %p362 = pneg %p216
        $region42: #{tpu_custom_call.1} parent=11 // pred_check_branch
          %364 = sbr.rel (%p362) target = $region44
        $region43: #{tpu_custom_call.1} parent=11 // pred_region
          _
        $region44: #{tpu_custom_call.1} parent=11 // pred_fallthru
          _
        // Predicated region
        $region45: #{tpu_custom_call.1} parent=11 // pred_check
          %p365 = pneg %p237
        $region46: #{tpu_custom_call.1} parent=11 // pred_check_branch
          %367 = sbr.rel (%p365) target = $region48
        $region47: #{tpu_custom_call.1} parent=11 // pred_region
          _
        $region48: #{tpu_custom_call.1} parent=11 // pred_fallthru
          _
        // Predicated region
        $region49: #{tpu_custom_call.1} parent=11 // pred_check
          %p368 = pneg %p258
        $region50: #{tpu_custom_call.1} parent=11 // pred_check_branch
          %370 = sbr.rel (%p368) target = $region52
        $region51: #{tpu_custom_call.1} parent=11 // pred_region
          _
        $region52: #{tpu_custom_call.1} parent=11 // pred_fallthru
          _
        // Predicated region
        $region53: #{tpu_custom_call.1} parent=11 // pred_check
          %p371 = pneg %p279
        $region54: #{tpu_custom_call.1} parent=11 // pred_check_branch
          %373 = sbr.rel (%p371) target = $region56
        $region55: #{tpu_custom_call.1} parent=11 // pred_region
          _
        $region56: #{tpu_custom_call.1} parent=11 // pred_fallthru
          _
        // Predicated region
        $region57: #{tpu_custom_call.1} parent=11 // pred_check
          %p374 = pneg %p300
        $region58: #{tpu_custom_call.1} parent=11 // pred_check_branch
          %376 = sbr.rel (%p374) target = $region60
        $region59: #{tpu_custom_call.1} parent=11 // pred_region
          _
        $region60: #{tpu_custom_call.1} parent=11 // pred_fallthru
          _
      $region12: #{tpu_custom_call.1} parent=5 // pred_fallthru
        _
      %p377 = scmp.lt.s32.totalorder %s22, 2
      // Predicated region
      $region61: #{tpu_custom_call.1} parent=5 // pred_check
        %p378 = pneg %p377
      $region62: #{tpu_custom_call.1} parent=5 // pred_check_branch
        %380 = sbr.rel (%p378) target = $region64
      $region63: #{tpu_custom_call.1} parent=5 // pred_region
        // Predicated region
        $region65: #{tpu_custom_call.1} parent=63 // pred_check
          %p381 = pneg %p42
        $region66: #{tpu_custom_call.1} parent=63 // pred_check_branch
          %383 = sbr.rel (%p381) target = $region68
        $region67: #{tpu_custom_call.1} parent=63 // pred_region
          %p384 = scmp.lt.s32.totalorder %s22, 1
          %s385 = scalar_select %p384, %s22, 1
          %s386 = smul.addr %s385, 8
          %s387 = scalar_lea.vmem %s0, %s386
        $region68: #{tpu_custom_call.1} parent=63 // pred_fallthru
          _
      $region64: #{tpu_custom_call.1} parent=5 // pred_fallthru
        _
      %p388 = scmp.le.s32.totalorder 1, %s22
      %p389 = scmp.lt.s32.totalorder %s22, 3
      %p390 = pnand %p388, %p389
      %p391 = pneg %p390
      // Predicated region
      $region69: #{tpu_custom_call.1} parent=5 // pred_check
        _
      $region70: #{tpu_custom_call.1} parent=5 // pred_check_branch
        %393 = sbr.rel (%p390) target = $region72
      $region71: #{tpu_custom_call.1} parent=5 // pred_region
        %s394 = ssub.s32 %s22, 1
        %p395 = scmp.lt.s32.totalorder %s27, 1
        %s396 = scalar_select %p395, %s27, 1
        %s397 = smul.addr %s396, 8
        %s398 = scalar_lea.vmem %s0, %s397
        %p399 = pneg %p48
        %p400 = pneg %p45
        %p401 = pneg %p69
        %p402 = pneg %p66
        %p403 = pneg %p90
        %p404 = pneg %p87
        %p405 = pneg %p111
        %p406 = pneg %p108
        %p407 = pneg %p132
        %p408 = pneg %p129
        %p409 = pneg %p153
        %p410 = pneg %p150
        %p411 = pneg %p174
        %p412 = pneg %p171
        %p413 = pneg %p195
        %p414 = pneg %p192
        %p415 = pneg %p216
        %p416 = pneg %p213
        %p417 = pneg %p237
        %p418 = pneg %p234
        %p419 = pneg %p258
        %p420 = pneg %p255
        %p421 = pneg %p279
        %p422 = pneg %p276
        %p423 = pneg %p300
        %p424 = pneg %p297
        %p425 = pneg %p326
        %p426 = pneg %p323
        %s427 = sand.u32 %s313, 1
        %s428 = scalar_lea.sflag [#allocation3], %s427
        %s429 = sand.u32 %s313, 1
        %s430 = smul.addr %s429, 8
        %s431 = scalar_lea.vmem [#allocation2], %s430
        %p432 = scmp.lt.s32.totalorder %s27, 1
        %s433 = scalar_select %p432, %s27, 1
        %s434 = smul.addr %s433, 8
        %s435 = scalar_lea.vmem %s0, %s434
        %v436 = vld [vmem:[%s435] sm:$0xff]
        %v437 = vld [vmem:[%s1] sm:$0x1]
        %v438 = vld [vmem:[%s2] sm:$0x1]
        %vm439 = vcmask 261120
        %v440 = vsel %vm439, %v436, 0.0
        %441 = vadd.xlane.f32.xlu0 %v440
        %v442 = vpop.xlane.xlu0 %441
        %v443 = vrcp.pop 32.0
        %v444 = vmul.f32 32.0, %v443
        %v445 = vsub.f32 1.0, %v444
        %v446 = vmul.f32 %v443, %v445
        %v447 = vadd.f32 %v443, %v446
        %vm448 = vweird.f32 %v443
        %v449 = vsel %vm448, %v443, %v447
        %v450 = vmul.f32 %v442, %v449
        %v451 = vsub.f32 %v436, %v450
        %v452 = vmul.f32 %v451, %v451
        %v453 = vsel %vm439, %v452, 0.0
        %454 = vadd.xlane.f32.xlu0 %v453
        %v455 = vpop.xlane.xlu0 %454
        %v456 = vmul.f32 %v455, %v449
        %v457 = vadd.f32 %v456, 1e-05
        %v458 = vrsqrt.pop %v457
        %v459 = vmul.f32 %v458, %v457
        %v460 = vmul.f32 %v459, %v458
        %v461 = vmul.f32 0.5, %v460
        %v462 = vsub.f32 1.5, %v461
        %v463 = vmul.f32 %v458, %v462
        %vm464 = vweird.f32 %v457
        %vm465 = vweird.f32 %v458
        %vm466 = vmor %vm464, %vm465
        %v467 = vsel %vm466, %v458, %v463
        %v468 = vmul.f32 %v451, %v467
        %v470 = vperm.slane %v437, 0
        %v472 = vmul.f32 %v468, %v470
        %v474 = vperm.slane %v438, 0
        %v476 = vadd.f32 %v472, %v474
        %v477 = vld [vmem:[%s3] sm:$0xff]
        %v478 = vld [vmem:[%s3 + $0x8] sm:$0xff]
        %v479 = vld [vmem:[%s3 + $0x10] sm:$0xff]
        %v480 = vld [vmem:[%s3 + $0x18] sm:$0xff]
        %v481 = vld [vmem:[%s4] sm:$0x1]
        %v483 = vperm.slane %v481, 0
        %v486 = vsel %vm439, %v476, 0
        %488 = vmatpush.msra.mxu0 0.0
        %489 = vmatpush.msra.mxu0 0.0
        %490 = vmatpush.msra.mxu0 0.0
        %491 = vmatpush.msra.mxu0 0.0
        %492 = vmatpush.msra.mxu0 0.0
        %493 = vmatpush.msra.mxu0 0.0
        %494 = vmatpush.msra.mxu0 0.0
        %495 = vmatpush.msra.mxu0 0.0
        %496 = vmatpush.msra.mxu0 0.0
        %497 = vmatpush.msra.mxu0 0.0
        %498 = vmatpush.msra.mxu0 0.0
        %499 = vmatpush.msra.mxu0 0.0
        %500 = vmatpush.msra.mxu0 %v480
        %501 = vmatpush.msra.mxu0 %v479
        %502 = vmatpush.msra.mxu0 %v478
        %503 = vmatpush.msra.mxu0 %v477
        %504 = vmatmul.f32.gmra.mxu0 %v486
        %v505 = vpop.f32.mrf.mxu0
        %v506 = vadd.f32 %v483, %v505
        %507 = vdwg.mxu0
        %509 = vrot.lane.b32.xlu0 %v506, 120
        %v510 = vpop.permute.xlu0 %509
        %511 = vrot.lane.b32.xlu0 %v506, 112
        %v512 = vpop.permute.xlu0 %511
        %513 = vrot.lane.b32.xlu0 %v506, 104
        %v514 = vpop.permute.xlu0 %513
        %515 = vrot.lane.b32.xlu0 %v506, 96
        %v516 = vpop.permute.xlu0 %515
        %vm517 = vcmask 64512
        %v518 = vsel %vm517, %v506, 0
        %v520 = vsel %vm517, %v516, 0
        %522 = vmatpush.xpose.msra.mxu0 0.0
        %523 = vmatpush.xpose.msra.mxu0 0.0
        %524 = vmatpush.xpose.msra.mxu0 0.0
        %525 = vmatpush.xpose.msra.mxu0 0.0
        %526 = vmatpush.xpose.msra.mxu0 0.0
        %527 = vmatpush.xpose.msra.mxu0 0.0
        %528 = vmatpush.xpose.msra.mxu0 0.0
        %529 = vmatpush.xpose.msra.mxu0 0.0
        %530 = vmatpush.xpose.msra.mxu0 0.0
        %531 = vmatpush.xpose.msra.mxu0 0.0
        %532 = vmatpush.xpose.msra.mxu0 0.0
        %533 = vmatpush.xpose.msra.mxu0 0.0
        %534 = vmatpush.xpose.msra.mxu0 0.0
        %535 = vmatpush.xpose.msra.mxu0 0.0
        %536 = vmatpush.xpose.msra.mxu0 0.0
        %537 = vmatpush.xpose.msra.mxu0 %v520
        %538 = vmatmul.f32.gmra.mxu0 %v518
        %v539 = vpop.f32.mrf.mxu0
        %v540 = vadd.f32 0.0, %v539
        %541 = vdwg.mxu0
        %542 = vrot.lane.b32.xlu0 %v510, 96
        %v543 = vpop.permute.xlu0 %542
        %v544 = vsel %vm517, %v510, 0
        %v546 = vsel %vm517, %v543, 0
        %548 = vmatpush.xpose.msra.mxu0 0.0
        %549 = vmatpush.xpose.msra.mxu0 0.0
        %550 = vmatpush.xpose.msra.mxu0 0.0
        %551 = vmatpush.xpose.msra.mxu0 0.0
        %552 = vmatpush.xpose.msra.mxu0 0.0
        %553 = vmatpush.xpose.msra.mxu0 0.0
        %554 = vmatpush.xpose.msra.mxu0 0.0
        %555 = vmatpush.xpose.msra.mxu0 0.0
        %556 = vmatpush.xpose.msra.mxu0 0.0
        %557 = vmatpush.xpose.msra.mxu0 0.0
        %558 = vmatpush.xpose.msra.mxu0 0.0
        %559 = vmatpush.xpose.msra.mxu0 0.0
        %560 = vmatpush.xpose.msra.mxu0 0.0
        %561 = vmatpush.xpose.msra.mxu0 0.0
        %562 = vmatpush.xpose.msra.mxu0 0.0
        %563 = vmatpush.xpose.msra.mxu0 %v546
        %564 = vmatmul.f32.gmra.mxu0 %v544
        %v565 = vpop.f32.mrf.mxu0
        %v566 = vadd.f32 0.0, %v565
        %567 = vdwg.mxu0
        %568 = vrot.lane.b32.xlu0 %v512, 96
        %v569 = vpop.permute.xlu0 %568
        %v570 = vsel %vm517, %v512, 0
        %v572 = vsel %vm517, %v569, 0
        %574 = vmatpush.xpose.msra.mxu0 0.0
        %575 = vmatpush.xpose.msra.mxu0 0.0
        %576 = vmatpush.xpose.msra.mxu0 0.0
        %577 = vmatpush.xpose.msra.mxu0 0.0
        %578 = vmatpush.xpose.msra.mxu0 0.0
        %579 = vmatpush.xpose.msra.mxu0 0.0
        %580 = vmatpush.xpose.msra.mxu0 0.0
        %581 = vmatpush.xpose.msra.mxu0 0.0
        %582 = vmatpush.xpose.msra.mxu0 0.0
        %583 = vmatpush.xpose.msra.mxu0 0.0
        %584 = vmatpush.xpose.msra.mxu0 0.0
        %585 = vmatpush.xpose.msra.mxu0 0.0
        %586 = vmatpush.xpose.msra.mxu0 0.0
        %587 = vmatpush.xpose.msra.mxu0 0.0
        %588 = vmatpush.xpose.msra.mxu0 0.0
        %589 = vmatpush.xpose.msra.mxu0 %v572
        %590 = vmatmul.f32.gmra.mxu0 %v570
        %v591 = vpop.f32.mrf.mxu0
        %v592 = vadd.f32 0.0, %v591
        %593 = vdwg.mxu0
        %594 = vrot.lane.b32.xlu0 %v514, 96
        %v595 = vpop.permute.xlu0 %594
        %v596 = vsel %vm517, %v514, 0
        %v598 = vsel %vm517, %v595, 0
        %600 = vmatpush.xpose.msra.mxu0 0.0
        %601 = vmatpush.xpose.msra.mxu0 0.0
        %602 = vmatpush.xpose.msra.mxu0 0.0
        %603 = vmatpush.xpose.msra.mxu0 0.0
        %604 = vmatpush.xpose.msra.mxu0 0.0
        %605 = vmatpush.xpose.msra.mxu0 0.0
        %606 = vmatpush.xpose.msra.mxu0 0.0
        %607 = vmatpush.xpose.msra.mxu0 0.0
        %608 = vmatpush.xpose.msra.mxu0 0.0
        %609 = vmatpush.xpose.msra.mxu0 0.0
        %610 = vmatpush.xpose.msra.mxu0 0.0
        %611 = vmatpush.xpose.msra.mxu0 0.0
        %612 = vmatpush.xpose.msra.mxu0 0.0
        %613 = vmatpush.xpose.msra.mxu0 0.0
        %614 = vmatpush.xpose.msra.mxu0 0.0
        %615 = vmatpush.xpose.msra.mxu0 %v598
        %616 = vmatmul.f32.gmra.mxu0 %v596
        %v617 = vpop.f32.mrf.mxu0
        %v618 = vadd.f32 0.0, %v617
        %619 = vdwg.mxu0
        %v620 = vsel %vm517, %v540, -inf
        %621 = vmax.xlane.f32.xlu0 %v620
        %v622 = vpop.xlane.xlu0 %621
        %v623 = vsel %vm517, %v566, -inf
        %624 = vmax.xlane.f32.xlu0 %v623
        %v625 = vpop.xlane.xlu0 %624
        %v626 = vsel %vm517, %v592, -inf
        %627 = vmax.xlane.f32.xlu0 %v626
        %v628 = vpop.xlane.xlu0 %627
        %v629 = vsel %vm517, %v618, -inf
        %630 = vmax.xlane.f32.xlu0 %v629
        %v631 = vpop.xlane.xlu0 %630
        %v632 = vsub.f32 %v540, %v622
        %v633 = vsub.f32 %v566, %v625
        %v634 = vsub.f32 %v592, %v628
        %v635 = vsub.f32 %v618, %v631
        %v636 = vmul.f32 %v632, 1.442695
        %v637 = vpow.pop %v636
        %v638 = vmul.f32 %v633, 1.442695
        %v639 = vpow.pop %v638
        %v640 = vmul.f32 %v634, 1.442695
        %v641 = vpow.pop %v640
        %v642 = vmul.f32 %v635, 1.442695
        %v643 = vpow.pop %v642
        %v644 = vsel %vm517, %v637, 0.0
        %645 = vadd.xlane.f32.xlu0 %v644
        %v646 = vpop.xlane.xlu0 %645
        %v647 = vsel %vm517, %v639, 0.0
        %648 = vadd.xlane.f32.xlu0 %v647
        %v649 = vpop.xlane.xlu0 %648
        %v650 = vsel %vm517, %v641, 0.0
        %651 = vadd.xlane.f32.xlu0 %v650
        %v652 = vpop.xlane.xlu0 %651
        %v653 = vsel %vm517, %v643, 0.0
        %654 = vadd.xlane.f32.xlu0 %v653
        %v655 = vpop.xlane.xlu0 %654
        %v656 = vrcp.pop %v646
        %v657 = vmul.f32 %v646, %v656
        %v658 = vsub.f32 1.0, %v657
        %v659 = vmul.f32 %v656, %v658
        %v660 = vadd.f32 %v656, %v659
        %vm661 = vweird.f32 %v646
        %vm662 = vweird.f32 %v656
        %vm663 = vmor %vm661, %vm662
        %v664 = vsel %vm663, %v656, %v660
        %v665 = vand.u32 2147483647, %v646
        %vm666 = vcmp.eq.f32.partialorder %v665, 8.507059e+37
        %v667 = vand.u32 %v646, 2147483648
        %v668 = vor.u32 1.1754944e-38, %v667
        %v669 = vsel %vm666, %v668, %v664
        %v670 = vmul.f32 1.0, %v669
        %v671 = vrcp.pop %v649
        %v672 = vmul.f32 %v649, %v671
        %v673 = vsub.f32 1.0, %v672
        %v674 = vmul.f32 %v671, %v673
        %v675 = vadd.f32 %v671, %v674
        %vm676 = vweird.f32 %v649
        %vm677 = vweird.f32 %v671
        %vm678 = vmor %vm676, %vm677
        %v679 = vsel %vm678, %v671, %v675
        %v680 = vand.u32 2147483647, %v649
        %vm681 = vcmp.eq.f32.partialorder %v680, 8.507059e+37
        %v682 = vand.u32 %v649, 2147483648
        %v683 = vor.u32 1.1754944e-38, %v682
        %v684 = vsel %vm681, %v683, %v679
        %v685 = vmul.f32 1.0, %v684
        %v686 = vrcp.pop %v652
        %v687 = vmul.f32 %v652, %v686
        %v688 = vsub.f32 1.0, %v687
        %v689 = vmul.f32 %v686, %v688
        %v690 = vadd.f32 %v686, %v689
        %vm691 = vweird.f32 %v652
        %vm692 = vweird.f32 %v686
        %vm693 = vmor %vm691, %vm692
        %v694 = vsel %vm693, %v686, %v690
        %v695 = vand.u32 2147483647, %v652
        %vm696 = vcmp.eq.f32.partialorder %v695, 8.507059e+37
        %v697 = vand.u32 %v652, 2147483648
        %v698 = vor.u32 1.1754944e-38, %v697
        %v699 = vsel %vm696, %v698, %v694
        %v700 = vmul.f32 1.0, %v699
        %v701 = vrcp.pop %v655
        %v702 = vmul.f32 %v655, %v701
        %v703 = vsub.f32 1.0, %v702
        %v704 = vmul.f32 %v701, %v703
        %v705 = vadd.f32 %v701, %v704
        %vm706 = vweird.f32 %v655
        %vm707 = vweird.f32 %v701
        %vm708 = vmor %vm706, %vm707
        %v709 = vsel %vm708, %v701, %v705
        %v710 = vand.u32 2147483647, %v655
        %vm711 = vcmp.eq.f32.partialorder %v710, 8.507059e+37
        %v712 = vand.u32 %v655, 2147483648
        %v713 = vor.u32 1.1754944e-38, %v712
        %v714 = vsel %vm711, %v713, %v709
        %v715 = vmul.f32 1.0, %v714
        %v716 = vmul.f32 %v637, %v670
        %v717 = vmul.f32 %v639, %v685
        %v718 = vmul.f32 %v641, %v700
        %v719 = vmul.f32 %v643, %v715
        %720 = vrot.lane.b32.xlu0 %v506, 64
        %v721 = vpop.permute.xlu0 %720
        %v724 = vsel %vm517, %v716, 0
        %726 = vmatpush.msra.mxu0 0.0
        %727 = vmatpush.msra.mxu0 0.0
        %728 = vmatpush.msra.mxu0 0.0
        %729 = vmatpush.msra.mxu0 0.0
        %730 = vmatpush.msra.mxu0 0.0
        %731 = vmatpush.msra.mxu0 0.0
        %732 = vmatpush.msra.mxu0 0.0
        %733 = vmatpush.msra.mxu0 0.0
        %734 = vmatpush.msra.mxu0 0.0
        %735 = vmatpush.msra.mxu0 0.0
        %736 = vmatpush.msra.mxu0 0.0
        %737 = vmatpush.msra.mxu0 0.0
        %738 = vmatpush.msra.mxu0 0.0
        %739 = vmatpush.msra.mxu0 0.0
        %740 = vmatpush.msra.mxu0 0.0
        %741 = vmatpush.msra.mxu0 %v721
        %742 = vmatmul.f32.gmra.mxu0 %v724
        %v743 = vpop.f32.mrf.mxu0
        %v744 = vadd.f32 0.0, %v743
        %745 = vdwg.mxu0
        %746 = vrot.lane.b32.xlu0 %v510, 64
        %v747 = vpop.permute.xlu0 %746
        %v750 = vsel %vm517, %v717, 0
        %752 = vmatpush.msra.mxu0 0.0
        %753 = vmatpush.msra.mxu0 0.0
        %754 = vmatpush.msra.mxu0 0.0
        %755 = vmatpush.msra.mxu0 0.0
        %756 = vmatpush.msra.mxu0 0.0
        %757 = vmatpush.msra.mxu0 0.0
        %758 = vmatpush.msra.mxu0 0.0
        %759 = vmatpush.msra.mxu0 0.0
        %760 = vmatpush.msra.mxu0 0.0
        %761 = vmatpush.msra.mxu0 0.0
        %762 = vmatpush.msra.mxu0 0.0
        %763 = vmatpush.msra.mxu0 0.0
        %764 = vmatpush.msra.mxu0 0.0
        %765 = vmatpush.msra.mxu0 0.0
        %766 = vmatpush.msra.mxu0 0.0
        %767 = vmatpush.msra.mxu0 %v747
        %768 = vmatmul.f32.gmra.mxu0 %v750
        %v769 = vpop.f32.mrf.mxu0
        %v770 = vadd.f32 0.0, %v769
        %771 = vdwg.mxu0
        %772 = vrot.lane.b32.xlu0 %v512, 64
        %v773 = vpop.permute.xlu0 %772
        %v776 = vsel %vm517, %v718, 0
        %778 = vmatpush.msra.mxu0 0.0
        %779 = vmatpush.msra.mxu0 0.0
        %780 = vmatpush.msra.mxu0 0.0
        %781 = vmatpush.msra.mxu0 0.0
        %782 = vmatpush.msra.mxu0 0.0
        %783 = vmatpush.msra.mxu0 0.0
        %784 = vmatpush.msra.mxu0 0.0
        %785 = vmatpush.msra.mxu0 0.0
        %786 = vmatpush.msra.mxu0 0.0
        %787 = vmatpush.msra.mxu0 0.0
        %788 = vmatpush.msra.mxu0 0.0
        %789 = vmatpush.msra.mxu0 0.0
        %790 = vmatpush.msra.mxu0 0.0
        %791 = vmatpush.msra.mxu0 0.0
        %792 = vmatpush.msra.mxu0 0.0
        %793 = vmatpush.msra.mxu0 %v773
        %794 = vmatmul.f32.gmra.mxu0 %v776
        %v795 = vpop.f32.mrf.mxu0
        %v796 = vadd.f32 0.0, %v795
        %797 = vdwg.mxu0
        %798 = vrot.lane.b32.xlu0 %v514, 64
        %v799 = vpop.permute.xlu0 %798
        %v802 = vsel %vm517, %v719, 0
        %804 = vmatpush.msra.mxu0 0.0
        %805 = vmatpush.msra.mxu0 0.0
        %806 = vmatpush.msra.mxu0 0.0
        %807 = vmatpush.msra.mxu0 0.0
        %808 = vmatpush.msra.mxu0 0.0
        %809 = vmatpush.msra.mxu0 0.0
        %810 = vmatpush.msra.mxu0 0.0
        %811 = vmatpush.msra.mxu0 0.0
        %812 = vmatpush.msra.mxu0 0.0
        %813 = vmatpush.msra.mxu0 0.0
        %814 = vmatpush.msra.mxu0 0.0
        %815 = vmatpush.msra.mxu0 0.0
        %816 = vmatpush.msra.mxu0 0.0
        %817 = vmatpush.msra.mxu0 0.0
        %818 = vmatpush.msra.mxu0 0.0
        %819 = vmatpush.msra.mxu0 %v799
        %820 = vmatmul.f32.gmra.mxu0 %v802
        %v821 = vpop.f32.mrf.mxu0
        %v822 = vadd.f32 0.0, %v821
        %823 = vdwg.mxu0
        %v824 = vld [vmem:[%s5] sm:$0xff]
        %v825 = vld [vmem:[%s5 + $0x8] sm:$0xff]
        %v826 = vld [vmem:[%s5 + $0x10] sm:$0xff]
        %v827 = vld [vmem:[%s5 + $0x18] sm:$0xff]
        %v829 = vsel %vm517, %v744, 0
        %831 = vmatpush.msra.mxu0 0.0
        %832 = vmatpush.msra.mxu0 0.0
        %833 = vmatpush.msra.mxu0 0.0
        %834 = vmatpush.msra.mxu0 0.0
        %835 = vmatpush.msra.mxu0 0.0
        %836 = vmatpush.msra.mxu0 0.0
        %837 = vmatpush.msra.mxu0 0.0
        %838 = vmatpush.msra.mxu0 0.0
        %839 = vmatpush.msra.mxu0 0.0
        %840 = vmatpush.msra.mxu0 0.0
        %841 = vmatpush.msra.mxu0 0.0
        %842 = vmatpush.msra.mxu0 0.0
        %843 = vmatpush.msra.mxu0 0.0
        %844 = vmatpush.msra.mxu0 0.0
        %845 = vmatpush.msra.mxu0 0.0
        %846 = vmatpush.msra.mxu0 %v824
        %847 = vmatmul.f32.gmra.mxu0 %v829
        %v848 = vpop.f32.mrf.mxu0
        %v849 = vadd.f32 0.0, %v848
        %850 = vdwg.mxu0
        %v852 = vsel %vm517, %v770, 0
        %854 = vmatpush.msra.mxu0 0.0
        %855 = vmatpush.msra.mxu0 0.0
        %856 = vmatpush.msra.mxu0 0.0
        %857 = vmatpush.msra.mxu0 0.0
        %858 = vmatpush.msra.mxu0 0.0
        %859 = vmatpush.msra.mxu0 0.0
        %860 = vmatpush.msra.mxu0 0.0
        %861 = vmatpush.msra.mxu0 0.0
        %862 = vmatpush.msra.mxu0 0.0
        %863 = vmatpush.msra.mxu0 0.0
        %864 = vmatpush.msra.mxu0 0.0
        %865 = vmatpush.msra.mxu0 0.0
        %866 = vmatpush.msra.mxu0 0.0
        %867 = vmatpush.msra.mxu0 0.0
        %868 = vmatpush.msra.mxu0 0.0
        %869 = vmatpush.msra.mxu0 %v825
        %870 = vmatmul.f32.gmra.mxu0 %v852
        %v871 = vpop.f32.mrf.mxu0
        %v872 = vadd.f32 0.0, %v871
        %873 = vdwg.mxu0
        %v875 = vsel %vm517, %v796, 0
        %877 = vmatpush.msra.mxu0 0.0
        %878 = vmatpush.msra.mxu0 0.0
        %879 = vmatpush.msra.mxu0 0.0
        %880 = vmatpush.msra.mxu0 0.0
        %881 = vmatpush.msra.mxu0 0.0
        %882 = vmatpush.msra.mxu0 0.0
        %883 = vmatpush.msra.mxu0 0.0
        %884 = vmatpush.msra.mxu0 0.0
        %885 = vmatpush.msra.mxu0 0.0
        %886 = vmatpush.msra.mxu0 0.0
        %887 = vmatpush.msra.mxu0 0.0
        %888 = vmatpush.msra.mxu0 0.0
        %889 = vmatpush.msra.mxu0 0.0
        %890 = vmatpush.msra.mxu0 0.0
        %891 = vmatpush.msra.mxu0 0.0
        %892 = vmatpush.msra.mxu0 %v826
        %893 = vmatmul.f32.gmra.mxu0 %v875
        %v894 = vpop.f32.mrf.mxu0
        %v895 = vadd.f32 0.0, %v894
        %896 = vdwg.mxu0
        %v898 = vsel %vm517, %v822, 0
        %900 = vmatpush.msra.mxu0 0.0
        %901 = vmatpush.msra.mxu0 0.0
        %902 = vmatpush.msra.mxu0 0.0
        %903 = vmatpush.msra.mxu0 0.0
        %904 = vmatpush.msra.mxu0 0.0
        %905 = vmatpush.msra.mxu0 0.0
        %906 = vmatpush.msra.mxu0 0.0
        %907 = vmatpush.msra.mxu0 0.0
        %908 = vmatpush.msra.mxu0 0.0
        %909 = vmatpush.msra.mxu0 0.0
        %910 = vmatpush.msra.mxu0 0.0
        %911 = vmatpush.msra.mxu0 0.0
        %912 = vmatpush.msra.mxu0 0.0
        %913 = vmatpush.msra.mxu0 0.0
        %914 = vmatpush.msra.mxu0 0.0
        %915 = vmatpush.msra.mxu0 %v827
        %916 = vmatmul.f32.gmra.mxu0 %v898
        %v917 = vpop.f32.mrf.mxu0
        %v918 = vadd.f32 0.0, %v917
        %919 = vdwg.mxu0
        %v920 = vsel %vm439, %v849, 0.0
        %v921 = vsel %vm439, %v872, 0.0
        %v922 = vadd.f32 %v920, %v921
        %v923 = vsel %vm439, %v895, 0.0
        %v924 = vadd.f32 %v922, %v923
        %v925 = vsel %vm439, %v918, 0.0
        %v926 = vadd.f32 %v924, %v925
        %v927 = vld [vmem:[%s6] sm:$0x1]
        %v929 = vperm.slane %v927, 0
        %v931 = vadd.f32 %v926, %v929
        %v932 = vadd.f32 %v436, %v931
        %v933 = vld [vmem:[%s7] sm:$0x1]
        %v934 = vld [vmem:[%s8] sm:$0x1]
        %v935 = vsel %vm439, %v932, 0.0
        %936 = vadd.xlane.f32.xlu0 %v935
        %v937 = vpop.xlane.xlu0 %936
        %v938 = vmul.f32 %v937, %v449
        %v939 = vsub.f32 %v932, %v938
        %v940 = vmul.f32 %v939, %v939
        %v941 = vsel %vm439, %v940, 0.0
        %942 = vadd.xlane.f32.xlu0 %v941
        %v943 = vpop.xlane.xlu0 %942
        %v944 = vmul.f32 %v943, %v449
        %v945 = vadd.f32 %v944, 1e-05
        %v946 = vrsqrt.pop %v945
        %v947 = vmul.f32 %v946, %v945
        %v948 = vmul.f32 %v947, %v946
        %v949 = vmul.f32 0.5, %v948
        %v950 = vsub.f32 1.5, %v949
        %v951 = vmul.f32 %v946, %v950
        %vm952 = vweird.f32 %v945
        %vm953 = vweird.f32 %v946
        %vm954 = vmor %vm952, %vm953
        %v955 = vsel %vm954, %v946, %v951
        %v956 = vmul.f32 %v939, %v955
        %v958 = vperm.slane %v933, 0
        %v960 = vmul.f32 %v956, %v958
        %v962 = vperm.slane %v934, 0
        %v964 = vadd.f32 %v960, %v962
        %v965 = vld [vmem:[%s9] sm:$0xff]
        %v966 = vld [vmem:[%s9 + $0x8] sm:$0xff]
        %v967 = vld [vmem:[%s9 + $0x10] sm:$0xff]
        %v968 = vld [vmem:[%s9 + $0x18] sm:$0xff]
        %v969 = vld [vmem:[%s10] sm:$0x1]
        %v971 = vperm.slane %v969, 0
        %v974 = vsel %vm439, %v964, 0
        %976 = vmatpush.msra.mxu0 0.0
        %977 = vmatpush.msra.mxu0 0.0
        %978 = vmatpush.msra.mxu0 0.0
        %979 = vmatpush.msra.mxu0 0.0
        %980 = vmatpush.msra.mxu0 0.0
        %981 = vmatpush.msra.mxu0 0.0
        %982 = vmatpush.msra.mxu0 0.0
        %983 = vmatpush.msra.mxu0 0.0
        %984 = vmatpush.msra.mxu0 0.0
        %985 = vmatpush.msra.mxu0 0.0
        %986 = vmatpush.msra.mxu0 0.0
        %987 = vmatpush.msra.mxu0 0.0
        %988 = vmatpush.msra.mxu0 %v968
        %989 = vmatpush.msra.mxu0 %v967
        %990 = vmatpush.msra.mxu0 %v966
        %991 = vmatpush.msra.mxu0 %v965
        %992 = vmatmul.f32.gmra.mxu0 %v974
        %v993 = vpop.f32.mrf.mxu0
        %v994 = vadd.f32 %v971, %v993
        %995 = vdwg.mxu0
        %v996 = vmul.f32 %v994, 0.5
        %v997 = vmul.f32 %v994, 0.70710677
        %v998 = vand.u32 2147483647, %v997
        %v999 = vmul.f32 %v998, 0.3275911
        %v1000 = vadd.f32 %v999, 1.0
        %v1001 = vrcp.pop %v1000
        %v1002 = vmul.f32 %v1000, %v1001
        %v1003 = vsub.f32 1.0, %v1002
        %v1004 = vmul.f32 %v1001, %v1003
        %v1005 = vadd.f32 %v1001, %v1004
        %vm1006 = vweird.f32 %v1000
        %vm1007 = vweird.f32 %v1001
        %vm1008 = vmor %vm1006, %vm1007
        %v1009 = vsel %vm1008, %v1001, %v1005
        %v1010 = vand.u32 2147483647, %v1000
        %vm1011 = vcmp.eq.f32.partialorder %v1010, 8.507059e+37
        %v1012 = vand.u32 %v1000, 2147483648
        %v1013 = vor.u32 1.1754944e-38, %v1012
        %v1014 = vsel %vm1011, %v1013, %v1009
        %v1015 = vmul.f32 1.0, %v1014
        %v1016 = vmul.f32 %v1015, 1.0614054
        %v1017 = vadd.f32 %v1016, -1.4531521
        %v1018 = vmul.f32 %v1017, %v1015
        %v1019 = vadd.f32 %v1018, 1.4214138
        %v1020 = vmul.f32 %v1019, %v1015
        %v1021 = vadd.f32 %v1020, -0.28449672
        %v1022 = vmul.f32 %v1021, %v1015
        %v1023 = vadd.f32 %v1022, 0.2548296
        %v1024 = vmul.f32 %v1023, %v1015
        %v1025 = vsub.f32 0.0, %v998
        %v1026 = vmul.f32 %v1025, %v998
        %v1027 = vmul.f32 %v1026, 1.442695
        %v1028 = vpow.pop %v1027
        %v1029 = vmul.f32 %v1024, %v1028
        %v1030 = vsub.f32 1.0, %v1029
        %vm1031 = vcmp.ge.f32.partialorder %v997, 0.0
        %v1032 = vsub.f32 0.0, %v1030
        %v1033 = vsel %vm1031, %v1030, %v1032
        %v1034 = vadd.f32 %v1033, 1.0
        %v1035 = vmul.f32 %v996, %v1034
        %v1036 = vld [vmem:[%s11] sm:$0xff]
        %v1037 = vld [vmem:[%s11 + $0x8] sm:$0xff]
        %v1038 = vld [vmem:[%s11 + $0x10] sm:$0xff]
        %v1039 = vld [vmem:[%s11 + $0x18] sm:$0xff]
        %v1040 = vld [vmem:[%s11 + $0x20] sm:$0xff]
        %v1041 = vld [vmem:[%s11 + $0x28] sm:$0xff]
        %v1042 = vld [vmem:[%s11 + $0x30] sm:$0xff]
        %v1043 = vld [vmem:[%s11 + $0x38] sm:$0xff]
        %v1044 = vld [vmem:[%s11 + $0x40] sm:$0xff]
        %v1045 = vld [vmem:[%s11 + $0x48] sm:$0xff]
        %v1046 = vld [vmem:[%s11 + $0x50] sm:$0xff]
        %v1047 = vld [vmem:[%s11 + $0x58] sm:$0xff]
        %v1048 = vld [vmem:[%s11 + $0x60] sm:$0xff]
        %v1049 = vld [vmem:[%s11 + $0x68] sm:$0xff]
        %v1050 = vld [vmem:[%s11 + $0x70] sm:$0xff]
        %v1051 = vld [vmem:[%s11 + $0x78] sm:$0xff]
        %v1052 = vld [vmem:[%s12] sm:$0x1]
        %v1054 = vperm.slane %v1052, 0
        %1056 = vmatpush.msra.mxu0 %v1051
        %1057 = vmatpush.msra.mxu0 %v1050
        %1058 = vmatpush.msra.mxu0 %v1049
        %1059 = vmatpush.msra.mxu0 %v1048
        %1060 = vmatpush.msra.mxu0 %v1047
        %1061 = vmatpush.msra.mxu0 %v1046
        %1062 = vmatpush.msra.mxu0 %v1045
        %1063 = vmatpush.msra.mxu0 %v1044
        %1064 = vmatpush.msra.mxu0 %v1043
        %1065 = vmatpush.msra.mxu0 %v1042
        %1066 = vmatpush.msra.mxu0 %v1041
        %1067 = vmatpush.msra.mxu0 %v1040
        %1068 = vmatpush.msra.mxu0 %v1039
        %1069 = vmatpush.msra.mxu0 %v1038
        %1070 = vmatpush.msra.mxu0 %v1037
        %1071 = vmatpush.msra.mxu0 %v1036
        %1072 = vmatmul.f32.gmra.mxu0 %v1035
        %v1073 = vpop.f32.mrf.mxu0
        %v1074 = vadd.f32 %v1054, %v1073
        %1075 = vdwg.mxu0
        %v1076 = vadd.f32 %v932, %v1074
        %1077 = vst.msk [vmem:[%s431] sm:$0xff] %vm439, %v1076
        %s1078 = sand.u32 %s313, 1
        %s1079 = scalar_lea.sflag [#allocation3], %s1078
        %s1080 = sand.u32 %s313, 1
        %s1081 = smul.addr %s1080, 8
        %s1082 = scalar_lea.vmem [#allocation2], %s1081
        // Predicated region
        $region73: #{tpu_custom_call.1} parent=71 // pred_check
          %p1083 = pneg %p323
        $region74: #{tpu_custom_call.1} parent=71 // pred_check_branch
          %1085 = sbr.rel (%p1083) target = $region76
        $region75: #{tpu_custom_call.1} parent=71 // pred_region
          %1087 = vsyncadd %s1079, 0
          %s1088 = smul.addr %s27, 8
          %s1089 = scalar_lea.hbm %s13, %s1088
          %s1091 = sshll.u32 %s1082, 4
          %s1092 = int_to_ptr.vmem [resolvable:$true] %s1091
          %s1093 = sshll.u32 %s1089, 4
          %s1094 = int_to_ptr.hbm [resolvable:$true] %s1093
          %1096 = dma.vmem_to_hbm [thread:$0]  %s1092, 128, %s1094, %s1079
        $region76: #{tpu_custom_call.1} parent=71 // pred_fallthru
          _
      $region72: #{tpu_custom_call.1} parent=5 // pred_fallthru
        _
      %p1097 = scmp.le.s32.totalorder 2, %s22
      // Predicated region
      $region77: #{tpu_custom_call.1} parent=5 // pred_check
        %p1098 = pneg %p1097
      $region78: #{tpu_custom_call.1} parent=5 // pred_check_branch
        %1100 = sbr.rel (%p1098) target = $region80
      $region79: #{tpu_custom_call.1} parent=5 // pred_region
        %s1101 = ssub.s32 %s22, 2
        // Predicated region
        $region81: #{tpu_custom_call.1} parent=79 // pred_check
          %p1102 = pneg %p329
        $region82: #{tpu_custom_call.1} parent=79 // pred_check_branch
          %1104 = sbr.rel (%p1102) target = $region84
        $region83: #{tpu_custom_call.1} parent=79 // pred_region
          %s1105 = sand.u32 %s314, 1
          %s1106 = scalar_lea.sflag [#allocation3], %s1105
          %s1107 = sand.u32 %s314, 1
          %s1108 = smul.addr %s1107, 8
          %s1109 = scalar_lea.vmem [#allocation2], %s1108
          %1111 = dma.done %s1106, 128
        $region84: #{tpu_custom_call.1} parent=79 // pred_fallthru
          _
      $region80: #{tpu_custom_call.1} parent=5 // pred_fallthru
        _
    $region6: #{tpu_custom_call.1} parent=1 // loop_footer
      %s26 = sadd.s32 1, %s22
    $region7: #{tpu_custom_call.1} parent=1 // loop_footer_branch
      %21 = sbr.rel target = $region3
    $region8: #{tpu_custom_call.1} parent=1 // loop_exit
      _
    %1112 = vsyncpa [#allocation3], 1
    %s1113 = scalar_lea.sflag [#allocation3], 1
    %1114 = vsyncpa %s1113, 1

</llo_original>
